<compile_context>
chip_gen: v7x
topology: tpu7x:2x2x1
jax: 0.10.0
libtpu: 0.0.40
codegen_flags: <defaults>
</compile_context>

<pallas_src>
import functools

import jax
import jax.numpy as jnp
from jax.experimental import pallas as pl
from jax.experimental.pallas import tpu as pltpu


# --------------------------------------------------------------------------
# Helpers
# --------------------------------------------------------------------------
def _round_up(a, b):
    return (a + b - 1) // b * b


def _choose_padding_and_tile(n):
    """Pad the graph dim so the streamed adj tile is never below 256."""
    if n <= 256:
        return 256, 256
    n256 = _round_up(n, 256)
    n512 = _round_up(n, 512)
    # Reach a 512-wide tile when the extra zero rows are <= ~12.5%.
    if n512 == n256 or (n512 - n256) * 8 <= n256:
        return n512, 512
    return n256, 256


@functools.lru_cache(maxsize=1)
def _vmem_limit_bytes():
    # ~96 MiB on v5e/v6e (128 MiB physical), ~48 MiB on v7x (64 MiB physical).
    try:
        return int(pltpu.get_tpu_info().vmem_capacity_bytes) * 3 // 4
    except Exception:
        return 32 << 20


@functools.lru_cache(maxsize=1)
def _buffered_supported():
    try:
        pl.BlockSpec((8, 128), lambda i: (0, 0), pipeline_mode=pl.Buffered(1))
        return True
    except Exception:
        return False


def _spec(shape, index_map, buffers=None):
    """BlockSpec with an optional explicit pipeline buffer count.

    buffers=1 marks operands whose index_map is constant (fully VMEM resident)
    so the default double-buffering does not duplicate them.
    """
    if buffers is None or not _buffered_supported():
        return pl.BlockSpec(shape, index_map)
    return pl.BlockSpec(shape, index_map, pipeline_mode=pl.Buffered(buffers))


# --------------------------------------------------------------------------
# Kernels
# --------------------------------------------------------------------------
def _make_fused_kernel(row_tile, compute_dtype):
    """adj fully VMEM-resident: both graph convs + fc3 in one pallas_call.

    grid = (phase, row tile).  Phase 0 writes hw2 = relu(adj@xw1 + b1) @ W2
    into a VMEM scratch; phase 1 computes relu(adj@hw2 + b2) and the fused fc3.
    """

    def kernel(adj_ref, xw1_ref, b1_ref, w2_ref, b2_ref, w3_ref, b3_ref,
               out_ref, hw2_ref):
        phase = pl.program_id(0)
        row = pl.multiple_of(pl.program_id(1) * row_tile, row_tile)
        a_rows = adj_ref[pl.ds(row, row_tile), :].astype(compute_dtype)

        @pl.when(phase == 0)
        def _layer1():
            acc = jnp.dot(a_rows, xw1_ref[...],
                          preferred_element_type=jnp.float32)
            h1 = jnp.maximum(acc + b1_ref[...], 0.0)
            # TODO(synk): F.dropout is identity in eval mode; training-mode
            # dropout would need pltpu.prng_seed / prng_random_bits masking.
            hw2_ref[pl.ds(row, row_tile), :] = jnp.dot(
                h1.astype(compute_dtype), w2_ref[...],
                preferred_element_type=jnp.float32).astype(hw2_ref.dtype)
            out_ref[...] = jnp.zeros_like(out_ref)   # overwritten in phase 1

        @pl.when(phase == 1)
        def _layer2():
            acc = jnp.dot(a_rows, hw2_ref[...],
                          preferred_element_type=jnp.float32)
            h2 = jnp.maximum(acc + b2_ref[...], 0.0)
            row_out = (jnp.sum(h2 * w3_ref[...], axis=-1, keepdims=True)
                       + b3_ref[0])
            out_ref[...] = row_out.astype(out_ref.dtype)

    return kernel


def _make_gcn1_kernel(tk, compute_dtype, rhs_resident):
    """hw2 = relu(adj @ xw1 + b1) @ W2, accumulated over k tiles of adj."""

    def kernel(adj_ref, xw1_ref, b1_ref, w2_ref, hw2_ref, acc_ref):
        k = pl.program_id(1)

        @pl.when(k == 0)
        def _init():
            acc_ref[...] = jnp.zeros_like(acc_ref)

        a_tile = adj_ref[...].astype(compute_dtype)
        if rhs_resident:
            off = pl.multiple_of(k * tk, tk)
            rhs = xw1_ref[pl.ds(off, tk), :]
        else:
            rhs = xw1_ref[...]
        acc_ref[...] += jnp.dot(a_tile, rhs, preferred_element_type=jnp.float32)

        @pl.when(k == pl.num_programs(1) - 1)
        def _epilogue():
            h1 = jnp.maximum(acc_ref[...] + b1_ref[...], 0.0)
            # TODO(synk): dropout is identity in eval mode (see fused kernel).
            hw2_ref[...] = jnp.dot(
                h1.astype(compute_dtype), w2_ref[...],
                preferred_element_type=jnp.float32).astype(hw2_ref.dtype)

    return kernel


def _make_gcn2_kernel(tk, compute_dtype, rhs_resident):
    """out = relu(adj @ hw2 + b2) @ w3 + b3 (fc3 on VPU, not MXU)."""

    def kernel(adj_ref, hw2_ref, b2_ref, w3_ref, b3_ref, out_ref, acc_ref):
        k = pl.program_id(1)

        @pl.when(k == 0)
        def _init():
            acc_ref[...] = jnp.zeros_like(acc_ref)

        a_tile = adj_ref[...].astype(compute_dtype)
        if rhs_resident:
            off = pl.multiple_of(k * tk, tk)
            rhs = hw2_ref[pl.ds(off, tk), :]
        else:
            rhs = hw2_ref[...]
        acc_ref[...] += jnp.dot(a_tile, rhs, preferred_element_type=jnp.float32)

        @pl.when(k == pl.num_programs(1) - 1)
        def _epilogue():
            h2 = jnp.maximum(acc_ref[...] + b2_ref[...], 0.0)
            row = jnp.sum(h2 * w3_ref[...], axis=-1, keepdims=True) + b3_ref[0]
            out_ref[...] = row.astype(out_ref.dtype)

    return kernel


# --------------------------------------------------------------------------
# Wrapper
# --------------------------------------------------------------------------
@functools.partial(jax.jit, static_argnames=("compute_dtype", "force_path",
                                              "force_rhs_tiled"))
def gpn_valuator_forward(x, adj, params, *, compute_dtype=jnp.bfloat16,
                         force_path=None, force_rhs_tiled=False):
    """x: [N, nfeat], adj: [N, N] (f32 or bf16).  Returns [N, 1] f32 (eval)."""
    n = x.shape[0]
    assert adj.shape == (n, n), (adj.shape, n)
    w1 = params["w1"].astype(jnp.float32)
    b1 = params["b1"].astype(jnp.float32)
    w2 = params["w2"].astype(jnp.float32)
    b2 = params["b2"].astype(jnp.float32)
    w3 = params["w3"].astype(jnp.float32)
    b3 = params["b3"]
    h1_dim, h2_dim = w1.shape[1], w2.shape[1]

    # Small-graph escape hatch: launch/pipeline overhead beats any kernel win.
    if force_path is None and n <= 128:
        xf = x.astype(jnp.float32)
        af = adj.astype(jnp.float32)
        h1 = jnp.maximum(af @ (xf @ w1) + b1, 0.0)
        h2 = jnp.maximum(af @ (h1 @ w2) + b2, 0.0)
        return h2 @ w3[:, None] + jnp.asarray(b3, jnp.float32)

    n_pad, tile = _choose_padding_and_tile(n)
    tm = tk = tile
    h1_p = _round_up(h1_dim, 128)
    h2_p = _round_up(h2_dim, 128)

    def pad2(a, rows, cols):
        pr, pc = rows - a.shape[0], cols - a.shape[1]
        return a if (pr == 0 and pc == 0) else jnp.pad(a, ((0, pr), (0, pc)))

    # adj stays in the caller's dtype (f32 or bf16); per-tile bf16 cast for the
    # MXU happens inside the kernels -> no wrapper-side N^2 cast round-trip.
    if adj.dtype not in (jnp.float32, jnp.bfloat16):
        adj = adj.astype(jnp.float32)
    adj_p = pad2(adj, n_pad, n_pad)

    # Tiny dense matmul x @ W1 is left to XLA; its [n_pad, h1_p] result is the
    # right operand of the first adj reduction.
    xw1 = pad2(jnp.dot(x.astype(jnp.float32), w1,
                       preferred_element_type=jnp.float32),
               n_pad, h1_p).astype(compute_dtype)
    w2_p = pad2(w2, h1_p, h2_p).astype(compute_dtype)
    b1_p = jnp.pad(b1, (0, h1_p - h1_dim)).reshape(1, h1_p)
    b2_p = jnp.pad(b2, (0, h2_p - h2_dim)).reshape(1, h2_p)
    w3_p = jnp.pad(w3, (0, h2_p - h2_dim)).reshape(1, h2_p)
    b3_p = jnp.asarray(b3, jnp.float32).reshape(1)

    r_tiles, k_tiles = n_pad // tm, n_pad // tk
    adj_elt = adj_p.dtype.itemsize
    elt_c = jnp.dtype(compute_dtype).itemsize
    adj_bytes = n_pad * n_pad * adj_elt
    vmem_limit = _vmem_limit_bytes()
    budget = int(vmem_limit * 0.8)
    res_factor = 1 if _buffered_supported() else 2   # no Buffered(1) -> 2 bufs

    # ---- adj-resident fast path ------------------------------------------
    tf = 256                      # fused-path row tile (keeps slice/cast temps small)
    resident_need = (res_factor * adj_bytes                 # adj, VMEM resident
                     + res_factor * n_pad * h1_p * elt_c    # x@W1 resident
                     + n_pad * h2_p * elt_c                 # hw2 VMEM scratch
                     + tf * n_pad * (adj_elt + elt_c)       # row-tile slice + cast temps
                     + tf * (h1_p + h2_p) * 4               # matmul temps
                     + (h1_p + 4) * h2_p * elt_c            # W2 / biases / w3
                     + 2 * tf * 4)                          # out double buffer
    use_resident = resident_need <= budget
    if force_path == "resident":
        use_resident = True
    elif force_path == "stream":
        use_resident = False

    if use_resident:
        rf_tiles = n_pad // tf
        out_pad = pl.pallas_call(
            _make_fused_kernel(tf, compute_dtype),
            out_shape=jax.ShapeDtypeStruct((n_pad, 1), jnp.float32),
            grid_spec=pltpu.PrefetchScalarGridSpec(
                num_scalar_prefetch=0,
                grid=(2, rf_tiles),                        # (phase, row tile)
                in_specs=[
                    _spec((n_pad, n_pad), lambda p, i: (0, 0), buffers=1),  # adj
                    _spec((n_pad, h1_p), lambda p, i: (0, 0), buffers=1),   # x@W1
                    _spec((1, h1_p), lambda p, i: (0, 0), buffers=1),       # b1
                    _spec((h1_p, h2_p), lambda p, i: (0, 0), buffers=1),    # W2
                    _spec((1, h2_p), lambda p, i: (0, 0), buffers=1),       # b2
                    _spec((1, h2_p), lambda p, i: (0, 0), buffers=1),       # w3
                    pl.BlockSpec(memory_space=pltpu.MemorySpace.SMEM),      # b3
                ],
                out_specs=pl.BlockSpec((tf, 1), lambda p, i: (i, 0)),
                scratch_shapes=[pltpu.VMEM((n_pad, h2_p), compute_dtype)]),
            compiler_params=pltpu.CompilerParams(
                # Phase 1 depends on every phase-0 row tile, so neither axis
                # may be sharded across cores.
                dimension_semantics=("arbitrary", "arbitrary"),
                vmem_limit_bytes=vmem_limit),
            cost_estimate=pl.CostEstimate(
                flops=2 * n_pad * n_pad * (h1_p + h2_p)
                      + 2 * n_pad * h1_p * h2_p + 2 * n_pad * h2_p,
                transcendentals=0,
                bytes_accessed=adj_bytes + n_pad * (h1_p + h2_p) * elt_c
                               + h1_p * h2_p * elt_c + n_pad * 4),
        )(adj_p, xw1, b1_p, w2_p, b2_p, w3_p, b3_p)
        return out_pad[:n]

    # ---- streaming path: two adj passes, k-reduction, f32 accumulator -----
    rhs_resident = not force_rhs_tiled
    if rhs_resident:
        stream_need = (3 * tm * tk * adj_elt                     # adj buffers
                       + res_factor * n_pad * h1_p * elt_c       # resident RHS
                       + tm * h1_p * 4                           # f32 accumulator
                       + h1_p * h2_p * elt_c + 2 * tm * h2_p * elt_c)
        rhs_resident = stream_need <= budget                     # else k-tiled (v7x large-N)

    if rhs_resident:
        xw1_spec = _spec((n_pad, h1_p), lambda i, k: (0, 0), buffers=1)
        hw2_in_spec = _spec((n_pad, h2_p), lambda i, k: (0, 0), buffers=1)
    else:
        xw1_spec = pl.BlockSpec((tk, h1_p), lambda i, k: (k, 0))
        hw2_in_spec = pl.BlockSpec((tk, h2_p), lambda i, k: (k, 0))

    # Triple-buffer the streamed adj for 256-wide tiles: the last-k epilogue
    # step is longer and would otherwise expose the next row-tile's first DMA.
    adj_spec = _spec((tm, tk), lambda i, k: (i, k),
                     buffers=(3 if tk <= 256 else None))

    # TODO(synk): pltpu.CORE_PARALLEL on the row axis would shard the two
    # streaming passes across v7x's two TensorCores; kept on "parallel" here.
    stream_params = pltpu.CompilerParams(
        dimension_semantics=("parallel", "arbitrary"),
        vmem_limit_bytes=vmem_limit)

    hw2 = pl.pallas_call(
        _make_gcn1_kernel(tk, compute_dtype, rhs_resident),
        out_shape=jax.ShapeDtypeStruct((n_pad, h2_p), compute_dtype),
        grid_spec=pltpu.PrefetchScalarGridSpec(
            num_scalar_prefetch=0,
            grid=(r_tiles, k_tiles),
            in_specs=[
                adj_spec,                                        # adj stream
                xw1_spec,                                        # x@W1
                _spec((1, h1_p), lambda i, k: (0, 0), buffers=1),    # b1
                _spec((h1_p, h2_p), lambda i, k: (0, 0), buffers=1), # W2
            ],
            out_specs=pl.BlockSpec((tm, h2_p), lambda i, k: (i, 0)),
            scratch_shapes=[pltpu.VMEM((tm, h1_p), jnp.float32)]),
        compiler_params=stream_params,
        cost_estimate=pl.CostEstimate(
            flops=2 * n_pad * n_pad * h1_p + 2 * n_pad * h1_p * h2_p,
            transcendentals=0,
            bytes_accessed=adj_bytes + n_pad * h1_p * elt_c
                           + n_pad * h2_p * elt_c + h1_p * h2_p * elt_c),
    )(adj_p, xw1, b1_p, w2_p)

    out_pad = pl.pallas_call(
        _make_gcn2_kernel(tk, compute_dtype, rhs_resident),
        out_shape=jax.ShapeDtypeStruct((n_pad, 1), jnp.float32),
        grid_spec=pltpu.PrefetchScalarGridSpec(
            num_scalar_prefetch=0,
            grid=(r_tiles, k_tiles),
            in_specs=[
                adj_spec,                                        # adj stream
                hw2_in_spec,                                     # relu(gc1)@W2
                _spec((1, h2_p), lambda i, k: (0, 0), buffers=1),    # b2
                _spec((1, h2_p), lambda i, k: (0, 0), buffers=1),    # w3
                pl.BlockSpec(memory_space=pltpu.MemorySpace.SMEM),   # b3
            ],
            out_specs=pl.BlockSpec((tm, 1), lambda i, k: (i, 0)),
            scratch_shapes=[pltpu.VMEM((tm, h2_p), jnp.float32)]),
        compiler_params=stream_params,
        cost_estimate=pl.CostEstimate(
            flops=2 * n_pad * n_pad * h2_p + 2 * n_pad * h2_p,
            transcendentals=0,
            bytes_accessed=adj_bytes + n_pad * h2_p * elt_c + n_pad * 4),
    )(adj_p, hw2, b2_p, w3_p, b3_p)

    return out_pad[:n]


# --------------------------------------------------------------------------
# Parameters / reference
# --------------------------------------------------------------------------
def init_params(nfeat, nhid, key):
    """Deterministic synthetic parameters matching the module's shapes."""
    ks = jax.random.split(key, 6)
    w1 = jax.random.uniform(ks[0], (nfeat, 2 * nhid), jnp.float32, -0.1, 0.1)
    b1 = jax.random.uniform(ks[1], (2 * nhid,), jnp.float32, -0.1, 0.1)
    w2 = jax.random.uniform(ks[2], (2 * nhid, nhid), jnp.float32, -0.1, 0.1)
    b2 = jax.random.uniform(ks[3], (nhid,), jnp.float32, -0.1, 0.1)
    w3 = jax.random.uniform(ks[4], (nhid,), jnp.float32, -0.1, 0.1)  # fc3 weight
    b3 = jax.random.uniform(ks[5], (), jnp.float32, -0.1, 0.1)       # fc3 bias
    return dict(w1=w1, b1=b1, w2=w2, b2=b2, w3=w3, b3=b3)


def reference_forward(x, adj, p):
    """Plain-JAX f32 reference of the PyTorch forward (eval mode)."""
    h1 = jnp.maximum(adj @ (x @ p["w1"]) + p["b1"], 0.0)
    h2 = jnp.maximum(adj @ (h1 @ p["w2"]) + p["b2"], 0.0)
    return h2 @ p["w3"][:, None] + p["b3"]


def _make_case(n, nfeat, nhid, seed=0):
    key = jax.random.PRNGKey(seed)
    kx, kadj, kp = jax.random.split(key, 3)
    x = jax.random.normal(kx, (n, nfeat), jnp.float32)
    # Symmetric, row-normalized adjacency with self-loops (typical GCN input).
    a = (jax.random.uniform(kadj, (n, n)) < 0.3).astype(jnp.float32)
    a = jnp.maximum(a, a.T) + jnp.eye(n, dtype=jnp.float32)
    adj = a / jnp.sum(a, axis=1, keepdims=True)
    return x, adj, init_params(nfeat, nhid, kp)


def _check(name, out, ref, atol=2e-2, rtol=2e-2):
    # bf16 adj/intermediate streaming (f32 accumulation) -> loosened tolerance.
    assert out.shape == ref.shape, (name, out.shape, ref.shape)
    err = float(jnp.max(jnp.abs(out - ref)))
    assert bool(jnp.allclose(out, ref, atol=atol, rtol=rtol)), (name, err)


# --------------------------------------------------------------------------
# Main
# --------------------------------------------------------------------------
if __name__ == "__main__":
    # Case A: medium graph -> adj-resident fused path (one pallas_call).
    x, adj, params = _make_case(256, 32, 32)
    ref = reference_forward(x, adj, params)
    out = gpn_valuator_forward(x, adj, params)
    jax.block_until_ready(out)
    _check("resident", out, ref)

    # Streaming path (two adj passes) with the VMEM-resident right operand ...
    out_s = gpn_valuator_forward(x, adj, params, force_path="stream")
    jax.block_until_ready(out_s)
    _check("stream/resident-rhs", out_s, ref)

    # ... and with the k-tiled right operand used for very large graphs (v7x).
    out_t = gpn_valuator_forward(x, adj, params, force_path="stream",
                                 force_rhs_tiled=True)
    jax.block_until_ready(out_t)
    _check("stream/tiled-rhs", out_t, ref)

    # Case B: non-aligned N -> zero padding + multi-tile grids on both paths.
    xb, adjb, pb = _make_case(640, 32, 16)
    refb = reference_forward(xb, adjb, pb)
    outb = gpn_valuator_forward(xb, adjb, pb)
    outb_s = gpn_valuator_forward(xb, adjb, pb, force_path="stream")
    jax.block_until_ready((outb, outb_s))
    _check("resident/padded", outb, refb)
    _check("stream/padded", outb_s, refb)

    # Case C: tiny graph -> XLA escape hatch (launch overhead dominates).
    xc, adjc, pc = _make_case(16, 32, 32)
    outc = gpn_valuator_forward(xc, adjc, pc)
    jax.block_until_ready(outc)
    _check("small-n fallback", outc, reference_forward(xc, adjc, pc),
           atol=1e-4, rtol=1e-4)

    print("KERNEL_OK")
</pallas_src>

<mosaic_0001>
module attributes {stable_mosaic.version = 11 : i64} {
  func.func @kernel(%arg0: i32, %arg1: i32, %arg2: memref<256x256xf32, #tpu.memory_space<vmem>>, %arg3: memref<256x128xbf16, #tpu.memory_space<vmem>>, %arg4: memref<1x128xf32, #tpu.memory_space<vmem>>, %arg5: memref<128x128xbf16, #tpu.memory_space<vmem>>, %arg6: memref<1x128xf32, #tpu.memory_space<vmem>>, %arg7: memref<1x128xf32, #tpu.memory_space<vmem>>, %arg8: memref<1xf32, #tpu.memory_space<smem>>, %arg9: memref<256x1xf32, #tpu.memory_space<vmem>>, %arg10: memref<256x128xbf16, #tpu.memory_space<vmem>>) attributes {dimension_semantics = [#tpu.dimension_semantics<arbitrary>, #tpu.dimension_semantics<arbitrary>], iteration_bounds = array<i64: 2, 1>, scalar_prefetch = 0 : i64, scratch_operands = 1 : i64, tpu.core_type = #tpu.core_type<tc>, window_params = [{pipeline_mode = #tpu.pipeline_mode<synchronous>, transform_indices = @transform_0, window_bounds = array<i64: 256, 256>}, {pipeline_mode = #tpu.pipeline_mode<synchronous>, transform_indices = @transform_1, window_bounds = array<i64: 256, 128>}, {pipeline_mode = #tpu.pipeline_mode<synchronous>, transform_indices = @transform_2, window_bounds = array<i64: 1, 128>}, {pipeline_mode = #tpu.pipeline_mode<synchronous>, transform_indices = @transform_3, window_bounds = array<i64: 128, 128>}, {pipeline_mode = #tpu.pipeline_mode<synchronous>, transform_indices = @transform_4, window_bounds = array<i64: 1, 128>}, {pipeline_mode = #tpu.pipeline_mode<synchronous>, transform_indices = @transform_5, window_bounds = array<i64: 1, 128>}, {transform_indices = @transform_6, window_bounds = array<i64: 1>}, {transform_indices = @transform_7, window_bounds = array<i64: 256, 1>}]} {
    %c256_i32 = arith.constant 256 : i32
    %0 = arith.muli %arg1, %c256_i32 : i32
    %1 = tpu.assume_multiple %0, 256 : i32
    %2 = arith.index_cast %1 : i32 to index
    %c0 = arith.constant 0 : index
    %3 = vector.load %arg2[%2, %c0] : memref<256x256xf32, #tpu.memory_space<vmem>>, vector<256x256xf32>
    %4 = arith.truncf %3 : vector<256x256xf32> to vector<256x256xbf16>
    %c0_i32 = arith.constant 0 : i32
    %5 = arith.cmpi eq, %arg0, %c0_i32 : i32
    %6 = arith.extui %5 : i1 to i32
    %c0_i32_0 = arith.constant 0 : i32
    %7 = arith.cmpi ne, %6, %c0_i32_0 : i32
    scf.if %7 {
      %c0_2 = arith.constant 0 : index
      %c0_3 = arith.constant 0 : index
      %11 = vector.load %arg3[%c0_2, %c0_3] : memref<256x128xbf16, #tpu.memory_space<vmem>>, vector<256x128xbf16>
      %cst = arith.constant dense<0.000000e+00> : vector<256x128xf32>
      %12 = tpu.matmul %4, %11, %cst {dimension_numbers = #tpu.dot_dimension_numbers<[1], [0], [0], [1], [0, 0, 1, 1], [], []>} : vector<256x256xbf16>, vector<256x128xbf16>, vector<256x128xf32> -> vector<256x128xf32>
      %c0_4 = arith.constant 0 : index
      %c0_5 = arith.constant 0 : index
      %13 = vector.load %arg4[%c0_4, %c0_5] : memref<1x128xf32, #tpu.memory_space<vmem>>, vector<1x128xf32>
      %14 = vector.broadcast %13 : vector<1x128xf32> to vector<256x128xf32>
      %15 = arith.addf %12, %14 : vector<256x128xf32>
      %cst_6 = arith.constant 0.000000e+00 : f32
      %16 = vector.broadcast %cst_6 : f32 to vector<256x128xf32>
      %17 = arith.maximumf %15, %16 : vector<256x128xf32>
      %18 = arith.truncf %17 : vector<256x128xf32> to vector<256x128xbf16>
      %c0_7 = arith.constant 0 : index
      %c0_8 = arith.constant 0 : index
      %19 = vector.load %arg5[%c0_7, %c0_8] : memref<128x128xbf16, #tpu.memory_space<vmem>>, vector<128x128xbf16>
      %cst_9 = arith.constant dense<0.000000e+00> : vector<256x128xf32>
      %20 = tpu.matmul %18, %19, %cst_9 {dimension_numbers = #tpu.dot_dimension_numbers<[1], [0], [0], [1], [0, 0, 1, 1], [], []>} : vector<256x128xbf16>, vector<128x128xbf16>, vector<256x128xf32> -> vector<256x128xf32>
      %21 = arith.truncf %20 : vector<256x128xf32> to vector<256x128xbf16>
      %22 = arith.index_cast %1 : i32 to index
      %c0_10 = arith.constant 0 : index
      %23 = vector.load %arg10[%22, %c0_10] : memref<256x128xbf16, #tpu.memory_space<vmem>>, vector<256x128xbf16>
      tpu.vector_store %arg10[%22, %c0_10], %21 {strides = array<i32>} : memref<256x128xbf16, #tpu.memory_space<vmem>>, vector<256x128xbf16>,
      %cst_11 = arith.constant 0.000000e+00 : f32
      %24 = vector.broadcast %cst_11 : f32 to vector<256x1xf32>
      %c0_12 = arith.constant 0 : index
      %c0_13 = arith.constant 0 : index
      %25 = vector.load %arg9[%c0_12, %c0_13] : memref<256x1xf32, #tpu.memory_space<vmem>>, vector<256x1xf32>
      tpu.vector_store %arg9[%c0_12, %c0_13], %24 {strides = array<i32>} : memref<256x1xf32, #tpu.memory_space<vmem>>, vector<256x1xf32>,
    } else {
    }
    %c1_i32 = arith.constant 1 : i32
    %8 = arith.cmpi eq, %arg0, %c1_i32 : i32
    %9 = arith.extui %8 : i1 to i32
    %c0_i32_1 = arith.constant 0 : i32
    %10 = arith.cmpi ne, %9, %c0_i32_1 : i32
    scf.if %10 {
      %c0_2 = arith.constant 0 : index
      %c0_3 = arith.constant 0 : index
      %11 = vector.load %arg10[%c0_2, %c0_3] : memref<256x128xbf16, #tpu.memory_space<vmem>>, vector<256x128xbf16>
      %cst = arith.constant dense<0.000000e+00> : vector<256x128xf32>
      %12 = tpu.matmul %4, %11, %cst {dimension_numbers = #tpu.dot_dimension_numbers<[1], [0], [0], [1], [0, 0, 1, 1], [], []>} : vector<256x256xbf16>, vector<256x128xbf16>, vector<256x128xf32> -> vector<256x128xf32>
      %c0_4 = arith.constant 0 : index
      %c0_5 = arith.constant 0 : index
      %13 = vector.load %arg6[%c0_4, %c0_5] : memref<1x128xf32, #tpu.memory_space<vmem>>, vector<1x128xf32>
      %14 = vector.broadcast %13 : vector<1x128xf32> to vector<256x128xf32>
      %15 = arith.addf %12, %14 : vector<256x128xf32>
      %cst_6 = arith.constant 0.000000e+00 : f32
      %16 = vector.broadcast %cst_6 : f32 to vector<256x128xf32>
      %17 = arith.maximumf %15, %16 : vector<256x128xf32>
      %c0_7 = arith.constant 0 : index
      %c0_8 = arith.constant 0 : index
      %18 = vector.load %arg7[%c0_7, %c0_8] : memref<1x128xf32, #tpu.memory_space<vmem>>, vector<1x128xf32>
      %19 = vector.broadcast %18 : vector<1x128xf32> to vector<256x128xf32>
      %20 = arith.mulf %17, %19 : vector<256x128xf32>
      %cst_9 = arith.constant dense<0.000000e+00> : vector<256xf32>
      %21 = vector.multi_reduction <add>, %20, %cst_9 [1] : vector<256x128xf32> to vector<256xf32>
      %22 = vector.shape_cast %21 : vector<256xf32> to vector<256x1xf32>
      %c0_10 = arith.constant 0 : index
      %23 = memref.load %arg8[%c0_10] : memref<1xf32, #tpu.memory_space<smem>>
      %24 = vector.broadcast %23 : f32 to vector<256x1xf32>
      %25 = arith.addf %22, %24 : vector<256x1xf32>
      %c0_11 = arith.constant 0 : index
      %c0_12 = arith.constant 0 : index
      %26 = vector.load %arg9[%c0_11, %c0_12] : memref<256x1xf32, #tpu.memory_space<vmem>>, vector<256x1xf32>
      tpu.vector_store %arg9[%c0_11, %c0_12], %25 {strides = array<i32>} : memref<256x1xf32, #tpu.memory_space<vmem>>, vector<256x1xf32>,
    } else {
    }
    return
  }
  func.func @transform_0(%arg0: i32, %arg1: i32) -> (i32, i32) {
    %c0_i32 = arith.constant 0 : i32
    %c0_i32_0 = arith.constant 0 : i32
    %c0_i32_1 = arith.constant 0 : i32
    return %c0_i32, %c0_i32_0 : i32, i32
  }
  func.func @transform_1(%arg0: i32, %arg1: i32) -> (i32, i32) {
    %c0_i32 = arith.constant 0 : i32
    %c0_i32_0 = arith.constant 0 : i32
    %c0_i32_1 = arith.constant 0 : i32
    return %c0_i32, %c0_i32_0 : i32, i32
  }
  func.func @transform_2(%arg0: i32, %arg1: i32) -> (i32, i32) {
    %c0_i32 = arith.constant 0 : i32
    %c0_i32_0 = arith.constant 0 : i32
    %c0_i32_1 = arith.constant 0 : i32
    return %c0_i32, %c0_i32_0 : i32, i32
  }
  func.func @transform_3(%arg0: i32, %arg1: i32) -> (i32, i32) {
    %c0_i32 = arith.constant 0 : i32
    %c0_i32_0 = arith.constant 0 : i32
    %c0_i32_1 = arith.constant 0 : i32
    return %c0_i32, %c0_i32_0 : i32, i32
  }
  func.func @transform_4(%arg0: i32, %arg1: i32) -> (i32, i32) {
    %c0_i32 = arith.constant 0 : i32
    %c0_i32_0 = arith.constant 0 : i32
    %c0_i32_1 = arith.constant 0 : i32
    return %c0_i32, %c0_i32_0 : i32, i32
  }
  func.func @transform_5(%arg0: i32, %arg1: i32) -> (i32, i32) {
    %c0_i32 = arith.constant 0 : i32
    %c0_i32_0 = arith.constant 0 : i32
    %c0_i32_1 = arith.constant 0 : i32
    return %c0_i32, %c0_i32_0 : i32, i32
  }
  func.func @transform_6(%arg0: i32, %arg1: i32) -> i32 {
    %c0_i32 = arith.constant 0 : i32
    %c0_i32_0 = arith.constant 0 : i32
    return %c0_i32 : i32
  }
  func.func @transform_7(%arg0: i32, %arg1: i32) -> (i32, i32) {
    %c0_i32 = arith.constant 0 : i32
    %c0_i32_0 = arith.constant 0 : i32
    return %arg1, %c0_i32 : i32, i32
  }
}

</mosaic_0001>

<llo_original>
// kernel: gpn_valuator_forward.1
$region0: #{gpn_valuator_forward.1}
  #allocation0 [shape = 'u32[]', space=smem, size = 0x4, offset = 0x4, fixed_abs, tag = 'smem constant byte address 0x4 - core index']
  #allocation1 [shape = 'u32[144,128]{1,0:T(1,128)}', space=vmem, size = 0x12000, scoped, tag = 'internal scratch']
  #allocation2 [shape = 'bf16[256,128]{1,0:T(16,128)(2,1)}', space=vmem, size = 0x10000, scoped, tag = 'scratch operand']
  #allocation3 [shape = 'f32[1]{0:T(128)S(6)}', space=smem, size = 0x200, scoped, tag = 'scoped memory for gpn_valuator_forward.1']
  %s0 = inlined_call_operand.vmem [shape: f32[256,256], index: 0, kind: input, shape index: {}]
  %s1 = inlined_call_operand.vmem [shape: bf16[256,128], index: 1, kind: input, shape index: {}]
  %s2 = inlined_call_operand.vmem [shape: f32[1,128], index: 2, kind: input, shape index: {}]
  %s3 = inlined_call_operand.vmem [shape: bf16[128,128], index: 3, kind: input, shape index: {}]
  %s4 = inlined_call_operand.vmem [shape: f32[1,128], index: 4, kind: input, shape index: {}]
  %s5 = inlined_call_operand.vmem [shape: f32[1,128], index: 5, kind: input, shape index: {}]
  %s6 = inlined_call_operand.<no memory space> [shape: f32[1], index: 6, kind: input, shape index: {}]
  %s7 = inlined_call_operand.vmem [shape: f32[256,1], index: 7, kind: output, shape index: {}]
  %s8 = sld [smem:[#allocation0]]
  $region69: #{gpn_valuator_forward.1} parent=0
    _
  %s10 = ssub.s32 1, %s8
  %s11 = scalar_select 0, %s10, %s8
  %12 = sst [smem:[#allocation3]] %s6
  loop: start=0, step=1, limit=4
  $region2: #{gpn_valuator_forward.1} parent=0 // loop_pre_header
    _
  $region3: #{gpn_valuator_forward.1} parent=0 // loop_header
    %s14 = sphi 0, %s18
    %p15 = scmp.ge.s32.totalorder %s14, 4
    %s21 = sphi 0, %s33
    %s22 = sphi 0, %s29
    %s23 = sphi 0, %s21
    %s24 = sphi 0, %s22
    %s25 = sphi 0, %s23
    %s26 = sphi 0, %s24
    %s34 = sphi 0, %s34
    %s36 = sphi 0, %s34
    %s37 = sphi 0, %s36
    %s51 = sphi 0, %s37
    %s55 = sphi 0, %s55
    %s57 = sphi 0, %s55
    %s58 = sphi 0, %s57
    %s72 = sphi 0, %s58
    %s76 = sphi 0, %s76
    %s78 = sphi 0, %s76
    %s79 = sphi 0, %s78
    %s93 = sphi 0, %s79
    %s97 = sphi 0, %s97
    %s99 = sphi 0, %s97
    %s100 = sphi 0, %s99
    %s114 = sphi 0, %s100
    %s118 = sphi 0, %s118
    %s120 = sphi 0, %s118
    %s121 = sphi 0, %s120
    %s135 = sphi 0, %s121
    %s139 = sphi 0, %s139
    %s141 = sphi 0, %s139
    %s142 = sphi 0, %s141
    %s156 = sphi 0, %s142
    %s160 = sphi 0, %s160
    %s162 = sphi 0, %s160
    %s163 = sphi 0, %s162
    %s177 = sphi 0, %s163
    %s183 = sphi 0, %s185
    %s186 = sphi 0, %s183
    %s187 = sphi 0, %s186
    %s203 = sphi 0, %s187
  $region4: #{gpn_valuator_forward.1} parent=0 // loop_header_branch
    %17 = sbr.rel (%p15) target = $region8
  $region5: #{gpn_valuator_forward.1} parent=0 // loop_body
    %s19 = ssub.s32 %s14, 1
    %s20 = ssub.s32 %s14, 2
    %s27 = sadd.s32 1, %s22
    %p28 = scmp.ge.s32.totalorder %s27, 1
    %s29 = scalar_select %p28, 0, %s27
    %s30 = sadd.s32 1, %s21
    %s31 = scalar_select %p28, %s30, %s21
    %p32 = scmp.ge.s32.totalorder %s31, 2
    %s33 = scalar_select %p32, 0, %s31
    %s35 = sadd.s32 %s34, 1
    %p38 = scmp.eq.s32.totalorder %s14, 1
    %p39 = scmp.ne.s32.totalorder %s34, %s36
    %p40 = scmp.eq.s32.totalorder %s14, 0
    %p41 = por %p39, %p40
    %p42 = scmp.ne.s32.totalorder %s34, %s36
    %p43 = scmp.eq.s32.totalorder %s19, 1
    %p44 = por %p42, %p43
    %p45 = scmp.ne.s32.totalorder %s36, %s37
    %p46 = scmp.eq.s32.totalorder %s19, 0
    %p47 = por %p45, %p46
    %p48 = scmp.ne.s32.totalorder %s36, %s37
    %p49 = scmp.eq.s32.totalorder %s20, 1
    %p50 = por %p48, %p49
    %p52 = scmp.ne.s32.totalorder %s37, %s51
    %p53 = scmp.eq.s32.totalorder %s20, 0
    %p54 = por %p52, %p53
    %s56 = sadd.s32 %s55, 1
    %p59 = scmp.eq.s32.totalorder %s14, 1
    %p60 = scmp.ne.s32.totalorder %s55, %s57
    %p61 = scmp.eq.s32.totalorder %s14, 0
    %p62 = por %p60, %p61
    %p63 = scmp.ne.s32.totalorder %s55, %s57
    %p64 = scmp.eq.s32.totalorder %s19, 1
    %p65 = por %p63, %p64
    %p66 = scmp.ne.s32.totalorder %s57, %s58
    %p67 = scmp.eq.s32.totalorder %s19, 0
    %p68 = por %p66, %p67
    %p69 = scmp.ne.s32.totalorder %s57, %s58
    %p70 = scmp.eq.s32.totalorder %s20, 1
    %p71 = por %p69, %p70
    %p73 = scmp.ne.s32.totalorder %s58, %s72
    %p74 = scmp.eq.s32.totalorder %s20, 0
    %p75 = por %p73, %p74
    %s77 = sadd.s32 %s76, 1
    %p80 = scmp.eq.s32.totalorder %s14, 1
    %p81 = scmp.ne.s32.totalorder %s76, %s78
    %p82 = scmp.eq.s32.totalorder %s14, 0
    %p83 = por %p81, %p82
    %p84 = scmp.ne.s32.totalorder %s76, %s78
    %p85 = scmp.eq.s32.totalorder %s19, 1
    %p86 = por %p84, %p85
    %p87 = scmp.ne.s32.totalorder %s78, %s79
    %p88 = scmp.eq.s32.totalorder %s19, 0
    %p89 = por %p87, %p88
    %p90 = scmp.ne.s32.totalorder %s78, %s79
    %p91 = scmp.eq.s32.totalorder %s20, 1
    %p92 = por %p90, %p91
    %p94 = scmp.ne.s32.totalorder %s79, %s93
    %p95 = scmp.eq.s32.totalorder %s20, 0
    %p96 = por %p94, %p95
    %s98 = sadd.s32 %s97, 1
    %p101 = scmp.eq.s32.totalorder %s14, 1
    %p102 = scmp.ne.s32.totalorder %s97, %s99
    %p103 = scmp.eq.s32.totalorder %s14, 0
    %p104 = por %p102, %p103
    %p105 = scmp.ne.s32.totalorder %s97, %s99
    %p106 = scmp.eq.s32.totalorder %s19, 1
    %p107 = por %p105, %p106
    %p108 = scmp.ne.s32.totalorder %s99, %s100
    %p109 = scmp.eq.s32.totalorder %s19, 0
    %p110 = por %p108, %p109
    %p111 = scmp.ne.s32.totalorder %s99, %s100
    %p112 = scmp.eq.s32.totalorder %s20, 1
    %p113 = por %p111, %p112
    %p115 = scmp.ne.s32.totalorder %s100, %s114
    %p116 = scmp.eq.s32.totalorder %s20, 0
    %p117 = por %p115, %p116
    %s119 = sadd.s32 %s118, 1
    %p122 = scmp.eq.s32.totalorder %s14, 1
    %p123 = scmp.ne.s32.totalorder %s118, %s120
    %p124 = scmp.eq.s32.totalorder %s14, 0
    %p125 = por %p123, %p124
    %p126 = scmp.ne.s32.totalorder %s118, %s120
    %p127 = scmp.eq.s32.totalorder %s19, 1
    %p128 = por %p126, %p127
    %p129 = scmp.ne.s32.totalorder %s120, %s121
    %p130 = scmp.eq.s32.totalorder %s19, 0
    %p131 = por %p129, %p130
    %p132 = scmp.ne.s32.totalorder %s120, %s121
    %p133 = scmp.eq.s32.totalorder %s20, 1
    %p134 = por %p132, %p133
    %p136 = scmp.ne.s32.totalorder %s121, %s135
    %p137 = scmp.eq.s32.totalorder %s20, 0
    %p138 = por %p136, %p137
    %s140 = sadd.s32 %s139, 1
    %p143 = scmp.eq.s32.totalorder %s14, 1
    %p144 = scmp.ne.s32.totalorder %s139, %s141
    %p145 = scmp.eq.s32.totalorder %s14, 0
    %p146 = por %p144, %p145
    %p147 = scmp.ne.s32.totalorder %s139, %s141
    %p148 = scmp.eq.s32.totalorder %s19, 1
    %p149 = por %p147, %p148
    %p150 = scmp.ne.s32.totalorder %s141, %s142
    %p151 = scmp.eq.s32.totalorder %s19, 0
    %p152 = por %p150, %p151
    %p153 = scmp.ne.s32.totalorder %s141, %s142
    %p154 = scmp.eq.s32.totalorder %s20, 1
    %p155 = por %p153, %p154
    %p157 = scmp.ne.s32.totalorder %s142, %s156
    %p158 = scmp.eq.s32.totalorder %s20, 0
    %p159 = por %p157, %p158
    %s161 = sadd.s32 %s160, 1
    %p164 = scmp.eq.s32.totalorder %s14, 1
    %p165 = scmp.ne.s32.totalorder %s160, %s162
    %p166 = scmp.eq.s32.totalorder %s14, 0
    %p167 = por %p165, %p166
    %p168 = scmp.ne.s32.totalorder %s160, %s162
    %p169 = scmp.eq.s32.totalorder %s19, 1
    %p170 = por %p168, %p169
    %p171 = scmp.ne.s32.totalorder %s162, %s163
    %p172 = scmp.eq.s32.totalorder %s19, 0
    %p173 = por %p171, %p172
    %p174 = scmp.ne.s32.totalorder %s162, %s163
    %p175 = scmp.eq.s32.totalorder %s20, 1
    %p176 = por %p174, %p175
    %p178 = scmp.ne.s32.totalorder %s163, %s177
    %p179 = scmp.eq.s32.totalorder %s20, 0
    %p180 = por %p178, %p179
    %s181 = ssub.s32 %s22, %s29
    %p182 = scmp.eq.s32.totalorder %s181, 0
    %s184 = sadd.s32 %s183, 1
    %s185 = scalar_select %p182, %s183, %s184
    %p188 = pneg %p182
    %p189 = scmp.eq.s32.totalorder %s14, 1
    %p190 = por %p188, %p189
    %p191 = scmp.ne.s32.totalorder %s183, %s186
    %p192 = scmp.eq.s32.totalorder %s14, 0
    %p193 = por %p191, %p192
    %p194 = scmp.ne.s32.totalorder %s183, %s186
    %p195 = scmp.eq.s32.totalorder %s19, 1
    %p196 = por %p194, %p195
    %p197 = scmp.ne.s32.totalorder %s186, %s187
    %p198 = scmp.eq.s32.totalorder %s19, 0
    %p199 = por %p197, %p198
    %p200 = scmp.ne.s32.totalorder %s186, %s187
    %p201 = scmp.eq.s32.totalorder %s20, 1
    %p202 = por %p200, %p201
    %p204 = scmp.ne.s32.totalorder %s187, %s203
    %p205 = scmp.eq.s32.totalorder %s20, 0
    %p206 = por %p204, %p205
    %p207 = scmp.le.s32.totalorder 1, %s14
    %p208 = scmp.lt.s32.totalorder %s14, 3
    %p209 = pnand %p207, %p208
    %p210 = pneg %p209
    // Predicated region
    $region9: #{gpn_valuator_forward.1} parent=5 // pred_check
      _
    $region10: #{gpn_valuator_forward.1} parent=5 // pred_check_branch
      %212 = sbr.rel (%p209) target = $region12
    $region11: #{gpn_valuator_forward.1} parent=5 // pred_region
      %s213 = ssub.s32 %s14, 1
      // Predicated region
      $region13: #{gpn_valuator_forward.1} parent=11 // pred_check
        %p214 = pneg %p47
      $region14: #{gpn_valuator_forward.1} parent=11 // pred_check_branch
        %216 = sbr.rel (%p214) target = $region16
      $region15: #{gpn_valuator_forward.1} parent=11 // pred_region
        _
      $region16: #{gpn_valuator_forward.1} parent=11 // pred_fallthru
        _
      // Predicated region
      $region17: #{gpn_valuator_forward.1} parent=11 // pred_check
        %p217 = pneg %p68
      $region18: #{gpn_valuator_forward.1} parent=11 // pred_check_branch
        %219 = sbr.rel (%p217) target = $region20
      $region19: #{gpn_valuator_forward.1} parent=11 // pred_region
        _
      $region20: #{gpn_valuator_forward.1} parent=11 // pred_fallthru
        _
      // Predicated region
      $region21: #{gpn_valuator_forward.1} parent=11 // pred_check
        %p220 = pneg %p89
      $region22: #{gpn_valuator_forward.1} parent=11 // pred_check_branch
        %222 = sbr.rel (%p220) target = $region24
      $region23: #{gpn_valuator_forward.1} parent=11 // pred_region
        _
      $region24: #{gpn_valuator_forward.1} parent=11 // pred_fallthru
        _
      // Predicated region
      $region25: #{gpn_valuator_forward.1} parent=11 // pred_check
        %p223 = pneg %p110
      $region26: #{gpn_valuator_forward.1} parent=11 // pred_check_branch
        %225 = sbr.rel (%p223) target = $region28
      $region27: #{gpn_valuator_forward.1} parent=11 // pred_region
        _
      $region28: #{gpn_valuator_forward.1} parent=11 // pred_fallthru
        _
      // Predicated region
      $region29: #{gpn_valuator_forward.1} parent=11 // pred_check
        %p226 = pneg %p131
      $region30: #{gpn_valuator_forward.1} parent=11 // pred_check_branch
        %228 = sbr.rel (%p226) target = $region32
      $region31: #{gpn_valuator_forward.1} parent=11 // pred_region
        _
      $region32: #{gpn_valuator_forward.1} parent=11 // pred_fallthru
        _
      // Predicated region
      $region33: #{gpn_valuator_forward.1} parent=11 // pred_check
        %p229 = pneg %p152
      $region34: #{gpn_valuator_forward.1} parent=11 // pred_check_branch
        %231 = sbr.rel (%p229) target = $region36
      $region35: #{gpn_valuator_forward.1} parent=11 // pred_region
        _
      $region36: #{gpn_valuator_forward.1} parent=11 // pred_fallthru
        _
      // Predicated region
      $region37: #{gpn_valuator_forward.1} parent=11 // pred_check
        %p232 = pneg %p173
      $region38: #{gpn_valuator_forward.1} parent=11 // pred_check_branch
        %234 = sbr.rel (%p232) target = $region40
      $region39: #{gpn_valuator_forward.1} parent=11 // pred_region
        _
      $region40: #{gpn_valuator_forward.1} parent=11 // pred_fallthru
        _
    $region12: #{gpn_valuator_forward.1} parent=5 // pred_fallthru
      _
    %p235 = scmp.lt.s32.totalorder %s14, 2
    // Predicated region
    $region41: #{gpn_valuator_forward.1} parent=5 // pred_check
      %p236 = pneg %p235
    $region42: #{gpn_valuator_forward.1} parent=5 // pred_check_branch
      %238 = sbr.rel (%p236) target = $region44
    $region43: #{gpn_valuator_forward.1} parent=5 // pred_region
      _
    $region44: #{gpn_valuator_forward.1} parent=5 // pred_fallthru
      _
    %p239 = scmp.le.s32.totalorder 1, %s14
    %p240 = scmp.lt.s32.totalorder %s14, 3
    %p241 = pnand %p239, %p240
    %p242 = pneg %p241
    // Predicated region
    $region45: #{gpn_valuator_forward.1} parent=5 // pred_check
      _
    $region46: #{gpn_valuator_forward.1} parent=5 // pred_check_branch
      %244 = sbr.rel (%p241) target = $region48
    $region47: #{gpn_valuator_forward.1} parent=5 // pred_region
      %s245 = ssub.s32 %s14, 1
      %p246 = pneg %p47
      %p247 = pneg %p44
      %p248 = pneg %p68
      %p249 = pneg %p65
      %p250 = pneg %p89
      %p251 = pneg %p86
      %p252 = pneg %p110
      %p253 = pneg %p107
      %p254 = pneg %p131
      %p255 = pneg %p128
      %p256 = pneg %p152
      %p257 = pneg %p149
      %p258 = pneg %p173
      %p259 = pneg %p170
      %p260 = pneg %p199
      %p261 = pneg %p196
      %s262 = smul.u32 32, %s24
      %p263 = scmp.lt.s32.totalorder %s262, 31
      %s264 = scalar_select %p263, %s262, 31
      %s265 = smul.addr %s264, 8
      %s266 = scalar_lea.vmem %s7, %s265
      %s267 = smul.u32 32, %s24
      %p268 = scmp.lt.s32.totalorder %s267, 31
      %s269 = scalar_select %p268, %s267, 31
      %s270 = smul.addr %s269, 8
      %s271 = scalar_lea.vmem %s7, %s270
      %s272 = smul.u32 32, %s24
      %s274 = smul.u32 %s24, 256
      %s275 = sshra.s32 %s274, 3
      %s276 = sand.u32 %s274, 7
      %s277 = smul.u32 %s275, 2
      %s278 = smul.addr %s277, 8
      %s279 = scalar_lea.vmem %s0, %s278
      %v280 = vld [vmem:[%s279] sm:$0xff]
      %v281 = vld [vmem:[%s279 + $0x8] sm:$0xff]
      %v282 = vld [vmem:[%s279 + $0x10] sm:$0xff]
      %v283 = vld [vmem:[%s279 + $0x18] sm:$0xff]
      %v284 = vld [vmem:[%s279 + $0x20] sm:$0xff]
      %v285 = vld [vmem:[%s279 + $0x28] sm:$0xff]
      %v286 = vld [vmem:[%s279 + $0x30] sm:$0xff]
      %v287 = vld [vmem:[%s279 + $0x38] sm:$0xff]
      %v288 = vld [vmem:[%s279 + $0x40] sm:$0xff]
      %v289 = vld [vmem:[%s279 + $0x48] sm:$0xff]
      %v290 = vld [vmem:[%s279 + $0x50] sm:$0xff]
      %v291 = vld [vmem:[%s279 + $0x58] sm:$0xff]
      %v292 = vld [vmem:[%s279 + $0x60] sm:$0xff]
      %v293 = vld [vmem:[%s279 + $0x68] sm:$0xff]
      %v294 = vld [vmem:[%s279 + $0x70] sm:$0xff]
      %v295 = vld [vmem:[%s279 + $0x78] sm:$0xff]
      %v296 = vld [vmem:[%s279 + $0x80] sm:$0xff]
      %v297 = vld [vmem:[%s279 + $0x88] sm:$0xff]
      %v298 = vld [vmem:[%s279 + $0x90] sm:$0xff]
      %v299 = vld [vmem:[%s279 + $0x98] sm:$0xff]
      %v300 = vld [vmem:[%s279 + $0xa0] sm:$0xff]
      %v301 = vld [vmem:[%s279 + $0xa8] sm:$0xff]
      %v302 = vld [vmem:[%s279 + $0xb0] sm:$0xff]
      %v303 = vld [vmem:[%s279 + $0xb8] sm:$0xff]
      %v304 = vld [vmem:[%s279 + $0xc0] sm:$0xff]
      %v305 = vld [vmem:[%s279 + $0xc8] sm:$0xff]
      %v306 = vld [vmem:[%s279 + $0xd0] sm:$0xff]
      %v307 = vld [vmem:[%s279 + $0xd8] sm:$0xff]
      %v308 = vld [vmem:[%s279 + $0xe0] sm:$0xff]
      %v309 = vld [vmem:[%s279 + $0xe8] sm:$0xff]
      %v310 = vld [vmem:[%s279 + $0xf0] sm:$0xff]
      %v311 = vld [vmem:[%s279 + $0xf8] sm:$0xff]
      %v312 = vld [vmem:[%s279 + $0x100] sm:$0xff]
      %v313 = vld [vmem:[%s279 + $0x108] sm:$0xff]
      %v314 = vld [vmem:[%s279 + $0x110] sm:$0xff]
      %v315 = vld [vmem:[%s279 + $0x118] sm:$0xff]
      %v316 = vld [vmem:[%s279 + $0x120] sm:$0xff]
      %v317 = vld [vmem:[%s279 + $0x128] sm:$0xff]
      %v318 = vld [vmem:[%s279 + $0x130] sm:$0xff]
      %v319 = vld [vmem:[%s279 + $0x138] sm:$0xff]
      %v320 = vld [vmem:[%s279 + $0x140] sm:$0xff]
      %v321 = vld [vmem:[%s279 + $0x148] sm:$0xff]
      %v322 = vld [vmem:[%s279 + $0x150] sm:$0xff]
      %v323 = vld [vmem:[%s279 + $0x158] sm:$0xff]
      %v324 = vld [vmem:[%s279 + $0x160] sm:$0xff]
      %v325 = vld [vmem:[%s279 + $0x168] sm:$0xff]
      %v326 = vld [vmem:[%s279 + $0x170] sm:$0xff]
      %v327 = vld [vmem:[%s279 + $0x178] sm:$0xff]
      %v328 = vld [vmem:[%s279 + $0x180] sm:$0xff]
      %v329 = vld [vmem:[%s279 + $0x188] sm:$0xff]
      %v330 = vld [vmem:[%s279 + $0x190] sm:$0xff]
      %v331 = vld [vmem:[%s279 + $0x198] sm:$0xff]
      %v332 = vld [vmem:[%s279 + $0x1a0] sm:$0xff]
      %v333 = vld [vmem:[%s279 + $0x1a8] sm:$0xff]
      %v334 = vld [vmem:[%s279 + $0x1b0] sm:$0xff]
      %v335 = vld [vmem:[%s279 + $0x1b8] sm:$0xff]
      %v336 = vld [vmem:[%s279 + $0x1c0] sm:$0xff]
      %v337 = vld [vmem:[%s279 + $0x1c8] sm:$0xff]
      %v338 = vld [vmem:[%s279 + $0x1d0] sm:$0xff]
      %v339 = vld [vmem:[%s279 + $0x1d8] sm:$0xff]
      %v340 = vld [vmem:[%s279 + $0x1e0] sm:$0xff]
      %v341 = vld [vmem:[%s279 + $0x1e8] sm:$0xff]
      %v342 = vld [vmem:[%s279 + $0x1f0] sm:$0xff]
      %v343 = vld [vmem:[%s279 + $0x1f8] sm:$0xff]
      %v344 = vpack.c.bf16 %v282, %v280
      %v345 = vpack.c.bf16 %v283, %v281
      %v346 = vpack.c.bf16 %v286, %v284
      %v347 = vpack.c.bf16 %v287, %v285
      %v348 = vpack.c.bf16 %v290, %v288
      %v349 = vpack.c.bf16 %v291, %v289
      %v350 = vpack.c.bf16 %v294, %v292
      %v351 = vpack.c.bf16 %v295, %v293
      %v352 = vpack.c.bf16 %v298, %v296
      %v353 = vpack.c.bf16 %v299, %v297
      %v354 = vpack.c.bf16 %v302, %v300
      %v355 = vpack.c.bf16 %v303, %v301
      %v356 = vpack.c.bf16 %v306, %v304
      %v357 = vpack.c.bf16 %v307, %v305
      %v358 = vpack.c.bf16 %v310, %v308
      %v359 = vpack.c.bf16 %v311, %v309
      %v360 = vpack.c.bf16 %v314, %v312
      %v361 = vpack.c.bf16 %v315, %v313
      %v362 = vpack.c.bf16 %v318, %v316
      %v363 = vpack.c.bf16 %v319, %v317
      %v364 = vpack.c.bf16 %v322, %v320
      %v365 = vpack.c.bf16 %v323, %v321
      %v366 = vpack.c.bf16 %v326, %v324
      %v367 = vpack.c.bf16 %v327, %v325
      %v368 = vpack.c.bf16 %v330, %v328
      %v369 = vpack.c.bf16 %v331, %v329
      %v370 = vpack.c.bf16 %v334, %v332
      %v371 = vpack.c.bf16 %v335, %v333
      %v372 = vpack.c.bf16 %v338, %v336
      %v373 = vpack.c.bf16 %v339, %v337
      %v374 = vpack.c.bf16 %v342, %v340
      %v375 = vpack.c.bf16 %v343, %v341
      %p376 = scmp.eq.s32.totalorder %s23, 0
      // Predicated region
      $region49: #{gpn_valuator_forward.1} parent=47 // pred_check
        %p377 = pneg %p376
      $region50: #{gpn_valuator_forward.1} parent=47 // pred_check_branch
        %379 = sbr.rel (%p377) target = $region52
      $region51: #{gpn_valuator_forward.1} parent=47 // pred_region
        %v380 = vld [vmem:[%s1] sm:$0xf]
        %v381 = vld [vmem:[%s1 + $0x4] sm:$0xf]
        %v382 = vld [vmem:[%s1 + $0x8] sm:$0xf]
        %v383 = vld [vmem:[%s1 + $0xc] sm:$0xf]
        %v384 = vld [vmem:[%s1 + $0x10] sm:$0xf]
        %v385 = vld [vmem:[%s1 + $0x14] sm:$0xf]
        %v386 = vld [vmem:[%s1 + $0x18] sm:$0xf]
        %v387 = vld [vmem:[%s1 + $0x1c] sm:$0xf]
        %v388 = vld [vmem:[%s1 + $0x20] sm:$0xf]
        %v389 = vld [vmem:[%s1 + $0x24] sm:$0xf]
        %v390 = vld [vmem:[%s1 + $0x28] sm:$0xf]
        %v391 = vld [vmem:[%s1 + $0x2c] sm:$0xf]
        %v392 = vld [vmem:[%s1 + $0x30] sm:$0xf]
        %v393 = vld [vmem:[%s1 + $0x34] sm:$0xf]
        %v394 = vld [vmem:[%s1 + $0x38] sm:$0xf]
        %v395 = vld [vmem:[%s1 + $0x3c] sm:$0xf]
        %v396 = vld [vmem:[%s1 + $0x40] sm:$0xf]
        %v397 = vld [vmem:[%s1 + $0x44] sm:$0xf]
        %v398 = vld [vmem:[%s1 + $0x48] sm:$0xf]
        %v399 = vld [vmem:[%s1 + $0x4c] sm:$0xf]
        %v400 = vld [vmem:[%s1 + $0x50] sm:$0xf]
        %v401 = vld [vmem:[%s1 + $0x54] sm:$0xf]
        %v402 = vld [vmem:[%s1 + $0x58] sm:$0xf]
        %v403 = vld [vmem:[%s1 + $0x5c] sm:$0xf]
        %v404 = vld [vmem:[%s1 + $0x60] sm:$0xf]
        %v405 = vld [vmem:[%s1 + $0x64] sm:$0xf]
        %v406 = vld [vmem:[%s1 + $0x68] sm:$0xf]
        %v407 = vld [vmem:[%s1 + $0x6c] sm:$0xf]
        %v408 = vld [vmem:[%s1 + $0x70] sm:$0xf]
        %v409 = vld [vmem:[%s1 + $0x74] sm:$0xf]
        %v410 = vld [vmem:[%s1 + $0x78] sm:$0xf]
        %v411 = vld [vmem:[%s1 + $0x7c] sm:$0xf]
        %v412 = vld [vmem:[%s2] sm:$0x1]
        %v414 = vlaneseq
        %v415 = vshrl.u32 %v414, 7
        %v416 = vsub.s32 0, %v415
        %v417 = vrot.slane %v412, %v416
        %v451 = vunpack.c.l.b16 %v380
        %v452 = vunpack.c.l.b16 %v381
        %v453 = vunpack.c.l.b16 %v382
        %v454 = vunpack.c.l.b16 %v383
        %v455 = vunpack.c.l.b16 %v384
        %v456 = vunpack.c.l.b16 %v385
        %v457 = vunpack.c.l.b16 %v386
        %v458 = vunpack.c.l.b16 %v387
        %v459 = vunpack.c.l.b16 %v388
        %v460 = vunpack.c.l.b16 %v389
        %v461 = vunpack.c.l.b16 %v390
        %v462 = vunpack.c.l.b16 %v391
        %v463 = vunpack.c.l.b16 %v392
        %v464 = vunpack.c.l.b16 %v393
        %v465 = vunpack.c.l.b16 %v394
        %v466 = vunpack.c.l.b16 %v395
        %v467 = vunpack.c.l.b16 %v396
        %v468 = vunpack.c.l.b16 %v397
        %v469 = vunpack.c.l.b16 %v398
        %v470 = vunpack.c.l.b16 %v399
        %v471 = vunpack.c.l.b16 %v400
        %v472 = vunpack.c.l.b16 %v401
        %v473 = vunpack.c.l.b16 %v402
        %v474 = vunpack.c.l.b16 %v403
        %v475 = vunpack.c.l.b16 %v404
        %v476 = vunpack.c.l.b16 %v405
        %v477 = vunpack.c.l.b16 %v406
        %v478 = vunpack.c.l.b16 %v407
        %v479 = vunpack.c.l.b16 %v408
        %v480 = vunpack.c.l.b16 %v409
        %v481 = vunpack.c.l.b16 %v410
        %v482 = vunpack.c.l.b16 %v411
        %v483 = vpack.c.b16 %v452, %v451
        %v484 = vpack.c.b16 %v454, %v453
        %v485 = vpack.c.b16 %v456, %v455
        %v486 = vpack.c.b16 %v458, %v457
        %v487 = vpack.c.b16 %v460, %v459
        %v488 = vpack.c.b16 %v462, %v461
        %v489 = vpack.c.b16 %v464, %v463
        %v490 = vpack.c.b16 %v466, %v465
        %v491 = vpack.c.b16 %v468, %v467
        %v492 = vpack.c.b16 %v470, %v469
        %v493 = vpack.c.b16 %v472, %v471
        %v494 = vpack.c.b16 %v474, %v473
        %v495 = vpack.c.b16 %v476, %v475
        %v496 = vpack.c.b16 %v478, %v477
        %v497 = vpack.c.b16 %v480, %v479
        %v498 = vpack.c.b16 %v482, %v481
        %515 = vmatprep.subr.bf16.mxu0 0
        %516 = vmatpush1.bf16.msra.mxu0 %v483
        %517 = vmatprep.subr.bf16.mxu0 0
        %518 = vmatpush1.bf16.msra.mxu0 %v484
        %519 = vmatprep.subr.bf16.mxu0 0
        %520 = vmatpush1.bf16.msra.mxu0 %v485
        %521 = vmatprep.subr.bf16.mxu0 0
        %522 = vmatpush1.bf16.msra.mxu0 %v486
        %523 = vmatprep.subr.bf16.mxu0 0
        %524 = vmatpush1.bf16.msra.mxu0 %v487
        %525 = vmatprep.subr.bf16.mxu0 0
        %526 = vmatpush1.bf16.msra.mxu0 %v488
        %527 = vmatprep.subr.bf16.mxu0 0
        %528 = vmatpush1.bf16.msra.mxu0 %v489
        %529 = vmatprep.subr.bf16.mxu0 0
        %530 = vmatpush1.bf16.msra.mxu0 %v490
        %531 = vmatprep.subr.bf16.mxu0 0
        %532 = vmatpush1.bf16.msra.mxu0 %v491
        %533 = vmatprep.subr.bf16.mxu0 0
        %534 = vmatpush1.bf16.msra.mxu0 %v492
        %535 = vmatprep.subr.bf16.mxu0 0
        %536 = vmatpush1.bf16.msra.mxu0 %v493
        %537 = vmatprep.subr.bf16.mxu0 0
        %538 = vmatpush1.bf16.msra.mxu0 %v494
        %539 = vmatprep.subr.bf16.mxu0 0
        %540 = vmatpush1.bf16.msra.mxu0 %v495
        %541 = vmatprep.subr.bf16.mxu0 0
        %542 = vmatpush1.bf16.msra.mxu0 %v496
        %543 = vmatprep.subr.bf16.mxu0 0
        %544 = vmatpush1.bf16.msra.mxu0 %v497
        %545 = vmatprep.subr.bf16.mxu0 0
        %546 = vmatpush1.bf16.msra.mxu0 %v498
        %547 = vmatprep.mubr.bf16.mxu0 %v345
        %548 = vmatmul.mubr.bf16.gmra.mrb[0].mxu0 %v344
        %v549 = vpop.f32.mrb[0].mxu0
        %v550 = vadd.f32 %v417, %v549
        %v551 = vpop.f32.mrb[0].mxu0
        %v552 = vpop.f32.mrb[0].mxu0
        %v553 = vadd.f32 %v417, %v552
        %v554 = vpop.f32.mrb[0].mxu0
        %555 = vmatprep.mubr.bf16.mxu0 %v347
        %556 = vmatmul.mubr.bf16.gmra.mrb[0].mxu0 %v346
        %v557 = vpop.f32.mrb[0].mxu0
        %v558 = vadd.f32 %v417, %v557
        %v559 = vpop.f32.mrb[0].mxu0
        %v560 = vpop.f32.mrb[0].mxu0
        %v561 = vadd.f32 %v417, %v560
        %v562 = vpop.f32.mrb[0].mxu0
        %563 = vmatprep.mubr.bf16.mxu0 %v349
        %564 = vmatmul.mubr.bf16.gmra.mrb[0].mxu0 %v348
        %v565 = vpop.f32.mrb[0].mxu0
        %v566 = vadd.f32 %v417, %v565
        %v567 = vpop.f32.mrb[0].mxu0
        %v568 = vpop.f32.mrb[0].mxu0
        %v569 = vadd.f32 %v417, %v568
        %v570 = vpop.f32.mrb[0].mxu0
        %571 = vmatprep.mubr.bf16.mxu0 %v351
        %572 = vmatmul.mubr.bf16.gmra.mrb[0].mxu0 %v350
        %v573 = vpop.f32.mrb[0].mxu0
        %v574 = vadd.f32 %v417, %v573
        %v575 = vpop.f32.mrb[0].mxu0
        %v576 = vpop.f32.mrb[0].mxu0
        %v577 = vadd.f32 %v417, %v576
        %v578 = vpop.f32.mrb[0].mxu0
        %579 = vmatprep.mubr.bf16.mxu0 %v353
        %580 = vmatmul.mubr.bf16.gmra.mrb[0].mxu0 %v352
        %v581 = vpop.f32.mrb[0].mxu0
        %v582 = vadd.f32 %v417, %v581
        %v583 = vpop.f32.mrb[0].mxu0
        %v584 = vpop.f32.mrb[0].mxu0
        %v585 = vadd.f32 %v417, %v584
        %v586 = vpop.f32.mrb[0].mxu0
        %587 = vmatprep.mubr.bf16.mxu0 %v355
        %588 = vmatmul.mubr.bf16.gmra.mrb[0].mxu0 %v354
        %v589 = vpop.f32.mrb[0].mxu0
        %v590 = vadd.f32 %v417, %v589
        %v591 = vpop.f32.mrb[0].mxu0
        %v592 = vpop.f32.mrb[0].mxu0
        %v593 = vadd.f32 %v417, %v592
        %v594 = vpop.f32.mrb[0].mxu0
        %595 = vmatprep.mubr.bf16.mxu0 %v357
        %596 = vmatmul.mubr.bf16.gmra.mrb[0].mxu0 %v356
        %v597 = vpop.f32.mrb[0].mxu0
        %v598 = vadd.f32 %v417, %v597
        %v599 = vpop.f32.mrb[0].mxu0
        %v600 = vpop.f32.mrb[0].mxu0
        %v601 = vadd.f32 %v417, %v600
        %v602 = vpop.f32.mrb[0].mxu0
        %603 = vmatprep.mubr.bf16.mxu0 %v359
        %604 = vmatmul.mubr.bf16.gmra.mrb[0].mxu0 %v358
        %v605 = vpop.f32.mrb[0].mxu0
        %v606 = vadd.f32 %v417, %v605
        %v607 = vpop.f32.mrb[0].mxu0
        %v608 = vpop.f32.mrb[0].mxu0
        %v609 = vadd.f32 %v417, %v608
        %v610 = vpop.f32.mrb[0].mxu0
        %611 = vmatprep.mubr.bf16.mxu0 %v361
        %612 = vmatmul.mubr.bf16.gmra.mrb[0].mxu0 %v360
        %v613 = vpop.f32.mrb[0].mxu0
        %v614 = vadd.f32 %v417, %v613
        %v615 = vpop.f32.mrb[0].mxu0
        %v616 = vpop.f32.mrb[0].mxu0
        %v617 = vadd.f32 %v417, %v616
        %v618 = vpop.f32.mrb[0].mxu0
        %619 = vmatprep.mubr.bf16.mxu0 %v363
        %620 = vmatmul.mubr.bf16.gmra.mrb[0].mxu0 %v362
        %v621 = vpop.f32.mrb[0].mxu0
        %v622 = vadd.f32 %v417, %v621
        %v623 = vpop.f32.mrb[0].mxu0
        %v624 = vpop.f32.mrb[0].mxu0
        %v625 = vadd.f32 %v417, %v624
        %v626 = vpop.f32.mrb[0].mxu0
        %627 = vmatprep.mubr.bf16.mxu0 %v365
        %628 = vmatmul.mubr.bf16.gmra.mrb[0].mxu0 %v364
        %v629 = vpop.f32.mrb[0].mxu0
        %v630 = vadd.f32 %v417, %v629
        %v631 = vpop.f32.mrb[0].mxu0
        %v632 = vpop.f32.mrb[0].mxu0
        %v633 = vadd.f32 %v417, %v632
        %v634 = vpop.f32.mrb[0].mxu0
        %635 = vmatprep.mubr.bf16.mxu0 %v367
        %636 = vmatmul.mubr.bf16.gmra.mrb[0].mxu0 %v366
        %v637 = vpop.f32.mrb[0].mxu0
        %v638 = vadd.f32 %v417, %v637
        %v639 = vpop.f32.mrb[0].mxu0
        %v640 = vpop.f32.mrb[0].mxu0
        %v641 = vadd.f32 %v417, %v640
        %v642 = vpop.f32.mrb[0].mxu0
        %643 = vmatprep.mubr.bf16.mxu0 %v369
        %644 = vmatmul.mubr.bf16.gmra.mrb[0].mxu0 %v368
        %v645 = vpop.f32.mrb[0].mxu0
        %v646 = vadd.f32 %v417, %v645
        %v647 = vpop.f32.mrb[0].mxu0
        %v648 = vpop.f32.mrb[0].mxu0
        %v649 = vadd.f32 %v417, %v648
        %v650 = vpop.f32.mrb[0].mxu0
        %651 = vmatprep.mubr.bf16.mxu0 %v371
        %652 = vmatmul.mubr.bf16.gmra.mrb[0].mxu0 %v370
        %v653 = vpop.f32.mrb[0].mxu0
        %v654 = vadd.f32 %v417, %v653
        %v655 = vpop.f32.mrb[0].mxu0
        %v656 = vpop.f32.mrb[0].mxu0
        %v657 = vadd.f32 %v417, %v656
        %v658 = vpop.f32.mrb[0].mxu0
        %659 = vmatprep.mubr.bf16.mxu0 %v373
        %660 = vmatmul.mubr.bf16.gmra.mrb[0].mxu0 %v372
        %v661 = vpop.f32.mrb[0].mxu0
        %v662 = vadd.f32 %v417, %v661
        %v663 = vpop.f32.mrb[0].mxu0
        %v664 = vpop.f32.mrb[0].mxu0
        %v665 = vadd.f32 %v417, %v664
        %v666 = vpop.f32.mrb[0].mxu0
        %667 = vmatprep.mubr.bf16.mxu0 %v375
        %668 = vmatmul.mubr.bf16.gmra.mrb[0].mxu0 %v374
        %v669 = vpop.f32.mrb[0].mxu0
        %v670 = vadd.f32 %v417, %v669
        %v671 = vpop.f32.mrb[0].mxu0
        %v672 = vpop.f32.mrb[0].mxu0
        %v673 = vadd.f32 %v417, %v672
        %v674 = vpop.f32.mrb[0].mxu0
        %675 = vdwg.mxu0
        %v676 = vmax.f32 %v550, 0.0
        %v677 = vmax.f32 %v553, 0.0
        %v678 = vmax.f32 %v558, 0.0
        %v679 = vmax.f32 %v561, 0.0
        %v680 = vmax.f32 %v566, 0.0
        %v681 = vmax.f32 %v569, 0.0
        %v682 = vmax.f32 %v574, 0.0
        %v683 = vmax.f32 %v577, 0.0
        %v684 = vmax.f32 %v582, 0.0
        %v685 = vmax.f32 %v585, 0.0
        %v686 = vmax.f32 %v590, 0.0
        %v687 = vmax.f32 %v593, 0.0
        %v688 = vmax.f32 %v598, 0.0
        %v689 = vmax.f32 %v601, 0.0
        %v690 = vmax.f32 %v606, 0.0
        %v691 = vmax.f32 %v609, 0.0
        %v692 = vmax.f32 %v614, 0.0
        %v693 = vmax.f32 %v617, 0.0
        %v694 = vmax.f32 %v622, 0.0
        %v695 = vmax.f32 %v625, 0.0
        %v696 = vmax.f32 %v630, 0.0
        %v697 = vmax.f32 %v633, 0.0
        %v698 = vmax.f32 %v638, 0.0
        %v699 = vmax.f32 %v641, 0.0
        %v700 = vmax.f32 %v646, 0.0
        %v701 = vmax.f32 %v649, 0.0
        %v702 = vmax.f32 %v654, 0.0
        %v703 = vmax.f32 %v657, 0.0
        %v704 = vmax.f32 %v662, 0.0
        %v705 = vmax.f32 %v665, 0.0
        %v706 = vmax.f32 %v670, 0.0
        %v707 = vmax.f32 %v673, 0.0
        %v708 = vpack.c.bf16 %v677, %v676
        %v709 = vpack.c.bf16 %v679, %v678
        %v710 = vpack.c.bf16 %v681, %v680
        %v711 = vpack.c.bf16 %v683, %v682
        %v712 = vpack.c.bf16 %v685, %v684
        %v713 = vpack.c.bf16 %v687, %v686
        %v714 = vpack.c.bf16 %v689, %v688
        %v715 = vpack.c.bf16 %v691, %v690
        %v716 = vpack.c.bf16 %v693, %v692
        %v717 = vpack.c.bf16 %v695, %v694
        %v718 = vpack.c.bf16 %v697, %v696
        %v719 = vpack.c.bf16 %v699, %v698
        %v720 = vpack.c.bf16 %v701, %v700
        %v721 = vpack.c.bf16 %v703, %v702
        %v722 = vpack.c.bf16 %v705, %v704
        %v723 = vpack.c.bf16 %v707, %v706
        %v724 = vld [vmem:[%s3] sm:$0xf]
        %v725 = vld [vmem:[%s3 + $0x4] sm:$0xf]
        %v726 = vld [vmem:[%s3 + $0x8] sm:$0xf]
        %v727 = vld [vmem:[%s3 + $0xc] sm:$0xf]
        %v728 = vld [vmem:[%s3 + $0x10] sm:$0xf]
        %v729 = vld [vmem:[%s3 + $0x14] sm:$0xf]
        %v730 = vld [vmem:[%s3 + $0x18] sm:$0xf]
        %v731 = vld [vmem:[%s3 + $0x1c] sm:$0xf]
        %v732 = vld [vmem:[%s3 + $0x20] sm:$0xf]
        %v733 = vld [vmem:[%s3 + $0x24] sm:$0xf]
        %v734 = vld [vmem:[%s3 + $0x28] sm:$0xf]
        %v735 = vld [vmem:[%s3 + $0x2c] sm:$0xf]
        %v736 = vld [vmem:[%s3 + $0x30] sm:$0xf]
        %v737 = vld [vmem:[%s3 + $0x34] sm:$0xf]
        %v738 = vld [vmem:[%s3 + $0x38] sm:$0xf]
        %v739 = vld [vmem:[%s3 + $0x3c] sm:$0xf]
        %v756 = vunpack.c.l.b16 %v724
        %v757 = vunpack.c.l.b16 %v725
        %v758 = vunpack.c.l.b16 %v726
        %v759 = vunpack.c.l.b16 %v727
        %v760 = vunpack.c.l.b16 %v728
        %v761 = vunpack.c.l.b16 %v729
        %v762 = vunpack.c.l.b16 %v730
        %v763 = vunpack.c.l.b16 %v731
        %v764 = vunpack.c.l.b16 %v732
        %v765 = vunpack.c.l.b16 %v733
        %v766 = vunpack.c.l.b16 %v734
        %v767 = vunpack.c.l.b16 %v735
        %v768 = vunpack.c.l.b16 %v736
        %v769 = vunpack.c.l.b16 %v737
        %v770 = vunpack.c.l.b16 %v738
        %v771 = vunpack.c.l.b16 %v739
        %v772 = vpack.c.b16 %v757, %v756
        %v773 = vpack.c.b16 %v759, %v758
        %v774 = vpack.c.b16 %v761, %v760
        %v775 = vpack.c.b16 %v763, %v762
        %v776 = vpack.c.b16 %v765, %v764
        %v777 = vpack.c.b16 %v767, %v766
        %v778 = vpack.c.b16 %v769, %v768
        %v779 = vpack.c.b16 %v771, %v770
        %788 = vmatprep.subr.bf16.mxu0 0
        %789 = vmatpush1.bf16.msra.mxu0 %v772
        %790 = vmatprep.subr.bf16.mxu0 0
        %791 = vmatpush1.bf16.msra.mxu0 %v773
        %792 = vmatprep.subr.bf16.mxu0 0
        %793 = vmatpush1.bf16.msra.mxu0 %v774
        %794 = vmatprep.subr.bf16.mxu0 0
        %795 = vmatpush1.bf16.msra.mxu0 %v775
        %796 = vmatprep.subr.bf16.mxu0 0
        %797 = vmatpush1.bf16.msra.mxu0 %v776
        %798 = vmatprep.subr.bf16.mxu0 0
        %799 = vmatpush1.bf16.msra.mxu0 %v777
        %800 = vmatprep.subr.bf16.mxu0 0
        %801 = vmatpush1.bf16.msra.mxu0 %v778
        %802 = vmatprep.subr.bf16.mxu0 0
        %803 = vmatpush1.bf16.msra.mxu0 %v779
        %804 = vmatprep.subr.bf16.mxu0 0
        %805 = vmatpush1.bf16.msra.mxu0 0
        %806 = vmatprep.subr.bf16.mxu0 0
        %807 = vmatpush1.bf16.msra.mxu0 0
        %808 = vmatprep.subr.bf16.mxu0 0
        %809 = vmatpush1.bf16.msra.mxu0 0
        %810 = vmatprep.subr.bf16.mxu0 0
        %811 = vmatpush1.bf16.msra.mxu0 0
        %812 = vmatprep.subr.bf16.mxu0 0
        %813 = vmatpush1.bf16.msra.mxu0 0
        %814 = vmatprep.subr.bf16.mxu0 0
        %815 = vmatpush1.bf16.msra.mxu0 0
        %816 = vmatprep.subr.bf16.mxu0 0
        %817 = vmatpush1.bf16.msra.mxu0 0
        %818 = vmatprep.subr.bf16.mxu0 0
        %819 = vmatpush1.bf16.msra.mxu0 0
        %820 = vmatprep.mubr.bf16.mxu0 0
        %821 = vmatmul.mubr.bf16.gmra.mrb[0].mxu0 %v708
        %v822 = vpop.f32.mrb[0].mxu0
        %v823 = vadd.f32 0.0, %v822
        %v824 = vpop.f32.mrb[0].mxu0
        %v825 = vpop.f32.mrb[0].mxu0
        %v826 = vadd.f32 0.0, %v825
        %v827 = vpop.f32.mrb[0].mxu0
        %828 = vmatprep.mubr.bf16.mxu0 0
        %829 = vmatmul.mubr.bf16.gmra.mrb[0].mxu0 %v709
        %v830 = vpop.f32.mrb[0].mxu0
        %v831 = vadd.f32 0.0, %v830
        %v832 = vpop.f32.mrb[0].mxu0
        %v833 = vpop.f32.mrb[0].mxu0
        %v834 = vadd.f32 0.0, %v833
        %v835 = vpop.f32.mrb[0].mxu0
        %836 = vmatprep.mubr.bf16.mxu0 0
        %837 = vmatmul.mubr.bf16.gmra.mrb[0].mxu0 %v710
        %v838 = vpop.f32.mrb[0].mxu0
        %v839 = vadd.f32 0.0, %v838
        %v840 = vpop.f32.mrb[0].mxu0
        %v841 = vpop.f32.mrb[0].mxu0
        %v842 = vadd.f32 0.0, %v841
        %v843 = vpop.f32.mrb[0].mxu0
        %844 = vmatprep.mubr.bf16.mxu0 0
        %845 = vmatmul.mubr.bf16.gmra.mrb[0].mxu0 %v711
        %v846 = vpop.f32.mrb[0].mxu0
        %v847 = vadd.f32 0.0, %v846
        %v848 = vpop.f32.mrb[0].mxu0
        %v849 = vpop.f32.mrb[0].mxu0
        %v850 = vadd.f32 0.0, %v849
        %v851 = vpop.f32.mrb[0].mxu0
        %852 = vmatprep.mubr.bf16.mxu0 0
        %853 = vmatmul.mubr.bf16.gmra.mrb[0].mxu0 %v712
        %v854 = vpop.f32.mrb[0].mxu0
        %v855 = vadd.f32 0.0, %v854
        %v856 = vpop.f32.mrb[0].mxu0
        %v857 = vpop.f32.mrb[0].mxu0
        %v858 = vadd.f32 0.0, %v857
        %v859 = vpop.f32.mrb[0].mxu0
        %860 = vmatprep.mubr.bf16.mxu0 0
        %861 = vmatmul.mubr.bf16.gmra.mrb[0].mxu0 %v713
        %v862 = vpop.f32.mrb[0].mxu0
        %v863 = vadd.f32 0.0, %v862
        %v864 = vpop.f32.mrb[0].mxu0
        %v865 = vpop.f32.mrb[0].mxu0
        %v866 = vadd.f32 0.0, %v865
        %v867 = vpop.f32.mrb[0].mxu0
        %868 = vmatprep.mubr.bf16.mxu0 0
        %869 = vmatmul.mubr.bf16.gmra.mrb[0].mxu0 %v714
        %v870 = vpop.f32.mrb[0].mxu0
        %v871 = vadd.f32 0.0, %v870
        %v872 = vpop.f32.mrb[0].mxu0
        %v873 = vpop.f32.mrb[0].mxu0
        %v874 = vadd.f32 0.0, %v873
        %v875 = vpop.f32.mrb[0].mxu0
        %876 = vmatprep.mubr.bf16.mxu0 0
        %877 = vmatmul.mubr.bf16.gmra.mrb[0].mxu0 %v715
        %v878 = vpop.f32.mrb[0].mxu0
        %v879 = vadd.f32 0.0, %v878
        %v880 = vpop.f32.mrb[0].mxu0
        %v881 = vpop.f32.mrb[0].mxu0
        %v882 = vadd.f32 0.0, %v881
        %v883 = vpop.f32.mrb[0].mxu0
        %884 = vmatprep.mubr.bf16.mxu0 0
        %885 = vmatmul.mubr.bf16.gmra.mrb[0].mxu0 %v716
        %v886 = vpop.f32.mrb[0].mxu0
        %v887 = vadd.f32 0.0, %v886
        %v888 = vpop.f32.mrb[0].mxu0
        %v889 = vpop.f32.mrb[0].mxu0
        %v890 = vadd.f32 0.0, %v889
        %v891 = vpop.f32.mrb[0].mxu0
        %892 = vmatprep.mubr.bf16.mxu0 0
        %893 = vmatmul.mubr.bf16.gmra.mrb[0].mxu0 %v717
        %v894 = vpop.f32.mrb[0].mxu0
        %v895 = vadd.f32 0.0, %v894
        %v896 = vpop.f32.mrb[0].mxu0
        %v897 = vpop.f32.mrb[0].mxu0
        %v898 = vadd.f32 0.0, %v897
        %v899 = vpop.f32.mrb[0].mxu0
        %900 = vmatprep.mubr.bf16.mxu0 0
        %901 = vmatmul.mubr.bf16.gmra.mrb[0].mxu0 %v718
        %v902 = vpop.f32.mrb[0].mxu0
        %v903 = vadd.f32 0.0, %v902
        %v904 = vpop.f32.mrb[0].mxu0
        %v905 = vpop.f32.mrb[0].mxu0
        %v906 = vadd.f32 0.0, %v905
        %v907 = vpop.f32.mrb[0].mxu0
        %908 = vmatprep.mubr.bf16.mxu0 0
        %909 = vmatmul.mubr.bf16.gmra.mrb[0].mxu0 %v719
        %v910 = vpop.f32.mrb[0].mxu0
        %v911 = vadd.f32 0.0, %v910
        %v912 = vpop.f32.mrb[0].mxu0
        %v913 = vpop.f32.mrb[0].mxu0
        %v914 = vadd.f32 0.0, %v913
        %v915 = vpop.f32.mrb[0].mxu0
        %916 = vmatprep.mubr.bf16.mxu0 0
        %917 = vmatmul.mubr.bf16.gmra.mrb[0].mxu0 %v720
        %v918 = vpop.f32.mrb[0].mxu0
        %v919 = vadd.f32 0.0, %v918
        %v920 = vpop.f32.mrb[0].mxu0
        %v921 = vpop.f32.mrb[0].mxu0
        %v922 = vadd.f32 0.0, %v921
        %v923 = vpop.f32.mrb[0].mxu0
        %924 = vmatprep.mubr.bf16.mxu0 0
        %925 = vmatmul.mubr.bf16.gmra.mrb[0].mxu0 %v721
        %v926 = vpop.f32.mrb[0].mxu0
        %v927 = vadd.f32 0.0, %v926
        %v928 = vpop.f32.mrb[0].mxu0
        %v929 = vpop.f32.mrb[0].mxu0
        %v930 = vadd.f32 0.0, %v929
        %v931 = vpop.f32.mrb[0].mxu0
        %932 = vmatprep.mubr.bf16.mxu0 0
        %933 = vmatmul.mubr.bf16.gmra.mrb[0].mxu0 %v722
        %v934 = vpop.f32.mrb[0].mxu0
        %v935 = vadd.f32 0.0, %v934
        %v936 = vpop.f32.mrb[0].mxu0
        %v937 = vpop.f32.mrb[0].mxu0
        %v938 = vadd.f32 0.0, %v937
        %v939 = vpop.f32.mrb[0].mxu0
        %940 = vmatprep.mubr.bf16.mxu0 0
        %941 = vmatmul.mubr.bf16.gmra.mrb[0].mxu0 %v723
        %v942 = vpop.f32.mrb[0].mxu0
        %v943 = vadd.f32 0.0, %v942
        %v944 = vpop.f32.mrb[0].mxu0
        %v945 = vpop.f32.mrb[0].mxu0
        %v946 = vadd.f32 0.0, %v945
        %v947 = vpop.f32.mrb[0].mxu0
        %948 = vdwg.mxu0
        %v949 = vpack.c.bf16 %v826, %v823
        %v950 = vpack.c.bf16 %v834, %v831
        %v951 = vpack.c.bf16 %v842, %v839
        %v952 = vpack.c.bf16 %v850, %v847
        %v953 = vpack.c.bf16 %v858, %v855
        %v954 = vpack.c.bf16 %v866, %v863
        %v955 = vpack.c.bf16 %v874, %v871
        %v956 = vpack.c.bf16 %v882, %v879
        %v957 = vpack.c.bf16 %v890, %v887
        %v958 = vpack.c.bf16 %v898, %v895
        %v959 = vpack.c.bf16 %v906, %v903
        %v960 = vpack.c.bf16 %v914, %v911
        %v961 = vpack.c.bf16 %v922, %v919
        %v962 = vpack.c.bf16 %v930, %v927
        %v963 = vpack.c.bf16 %v938, %v935
        %v964 = vpack.c.bf16 %v946, %v943
        %s965 = sshra.s32 %s274, 4
        %s966 = sand.u32 %s274, 15
        %s967 = smul.addr %s965, 8
        %s968 = scalar_lea.vmem [#allocation2], %s967
        %969 = vst [vmem:[%s968] sm:$0xff] %v949
        %970 = vst [vmem:[%s968 + $0x8] sm:$0xff] %v950
        %971 = vst [vmem:[%s968 + $0x10] sm:$0xff] %v951
        %972 = vst [vmem:[%s968 + $0x18] sm:$0xff] %v952
        %973 = vst [vmem:[%s968 + $0x20] sm:$0xff] %v953
        %974 = vst [vmem:[%s968 + $0x28] sm:$0xff] %v954
        %975 = vst [vmem:[%s968 + $0x30] sm:$0xff] %v955
        %976 = vst [vmem:[%s968 + $0x38] sm:$0xff] %v956
        %977 = vst [vmem:[%s968 + $0x40] sm:$0xff] %v957
        %978 = vst [vmem:[%s968 + $0x48] sm:$0xff] %v958
        %979 = vst [vmem:[%s968 + $0x50] sm:$0xff] %v959
        %980 = vst [vmem:[%s968 + $0x58] sm:$0xff] %v960
        %981 = vst [vmem:[%s968 + $0x60] sm:$0xff] %v961
        %982 = vst [vmem:[%s968 + $0x68] sm:$0xff] %v962
        %983 = vst [vmem:[%s968 + $0x70] sm:$0xff] %v963
        %984 = vst [vmem:[%s968 + $0x78] sm:$0xff] %v964
        %vm985 = vcmask 7168
        %986 = vst.msk [vmem:[%s271] sm:$0xff] %vm985, 0.0
        %987 = vst.msk [vmem:[%s271 + $0x8] sm:$0xff] %vm985, 0.0
        %988 = vst.msk [vmem:[%s271 + $0x10] sm:$0xff] %vm985, 0.0
        %989 = vst.msk [vmem:[%s271 + $0x18] sm:$0xff] %vm985, 0.0
        %990 = vst.msk [vmem:[%s271 + $0x20] sm:$0xff] %vm985, 0.0
        %991 = vst.msk [vmem:[%s271 + $0x28] sm:$0xff] %vm985, 0.0
        %992 = vst.msk [vmem:[%s271 + $0x30] sm:$0xff] %vm985, 0.0
        %993 = vst.msk [vmem:[%s271 + $0x38] sm:$0xff] %vm985, 0.0
        %994 = vst.msk [vmem:[%s271 + $0x40] sm:$0xff] %vm985, 0.0
        %995 = vst.msk [vmem:[%s271 + $0x48] sm:$0xff] %vm985, 0.0
        %996 = vst.msk [vmem:[%s271 + $0x50] sm:$0xff] %vm985, 0.0
        %997 = vst.msk [vmem:[%s271 + $0x58] sm:$0xff] %vm985, 0.0
        %998 = vst.msk [vmem:[%s271 + $0x60] sm:$0xff] %vm985, 0.0
        %999 = vst.msk [vmem:[%s271 + $0x68] sm:$0xff] %vm985, 0.0
        %1000 = vst.msk [vmem:[%s271 + $0x70] sm:$0xff] %vm985, 0.0
        %1001 = vst.msk [vmem:[%s271 + $0x78] sm:$0xff] %vm985, 0.0
        %1002 = vst.msk [vmem:[%s271 + $0x80] sm:$0xff] %vm985, 0.0
        %1003 = vst.msk [vmem:[%s271 + $0x88] sm:$0xff] %vm985, 0.0
        %1004 = vst.msk [vmem:[%s271 + $0x90] sm:$0xff] %vm985, 0.0
        %1005 = vst.msk [vmem:[%s271 + $0x98] sm:$0xff] %vm985, 0.0
        %1006 = vst.msk [vmem:[%s271 + $0xa0] sm:$0xff] %vm985, 0.0
        %1007 = vst.msk [vmem:[%s271 + $0xa8] sm:$0xff] %vm985, 0.0
        %1008 = vst.msk [vmem:[%s271 + $0xb0] sm:$0xff] %vm985, 0.0
        %1009 = vst.msk [vmem:[%s271 + $0xb8] sm:$0xff] %vm985, 0.0
        %1010 = vst.msk [vmem:[%s271 + $0xc0] sm:$0xff] %vm985, 0.0
        %1011 = vst.msk [vmem:[%s271 + $0xc8] sm:$0xff] %vm985, 0.0
        %1012 = vst.msk [vmem:[%s271 + $0xd0] sm:$0xff] %vm985, 0.0
        %1013 = vst.msk [vmem:[%s271 + $0xd8] sm:$0xff] %vm985, 0.0
        %1014 = vst.msk [vmem:[%s271 + $0xe0] sm:$0xff] %vm985, 0.0
        %1015 = vst.msk [vmem:[%s271 + $0xe8] sm:$0xff] %vm985, 0.0
        %1016 = vst.msk [vmem:[%s271 + $0xf0] sm:$0xff] %vm985, 0.0
        %1017 = vst.msk [vmem:[%s271 + $0xf8] sm:$0xff] %vm985, 0.0
      $region52: #{gpn_valuator_forward.1} parent=47 // pred_fallthru
        _
      %p1018 = scmp.eq.s32.totalorder %s23, 1
      // Predicated region
      $region53: #{gpn_valuator_forward.1} parent=47 // pred_check
        %p1019 = pneg %p1018
      $region54: #{gpn_valuator_forward.1} parent=47 // pred_check_branch
        %1021 = sbr.rel (%p1019) target = $region56
      $region55: #{gpn_valuator_forward.1} parent=47 // pred_region
        %v1022 = vld [vmem:[#allocation2] sm:$0xff]
        %v1023 = vld [vmem:[#allocation2 + $0x8] sm:$0xff]
        %v1024 = vld [vmem:[#allocation2 + $0x10] sm:$0xff]
        %v1025 = vld [vmem:[#allocation2 + $0x18] sm:$0xff]
        %v1026 = vld [vmem:[#allocation2 + $0x20] sm:$0xff]
        %v1027 = vld [vmem:[#allocation2 + $0x28] sm:$0xff]
        %v1028 = vld [vmem:[#allocation2 + $0x30] sm:$0xff]
        %v1029 = vld [vmem:[#allocation2 + $0x38] sm:$0xff]
        %v1030 = vld [vmem:[#allocation2 + $0x40] sm:$0xff]
        %v1031 = vld [vmem:[#allocation2 + $0x48] sm:$0xff]
        %v1032 = vld [vmem:[#allocation2 + $0x50] sm:$0xff]
        %v1033 = vld [vmem:[#allocation2 + $0x58] sm:$0xff]
        %v1034 = vld [vmem:[#allocation2 + $0x60] sm:$0xff]
        %v1035 = vld [vmem:[#allocation2 + $0x68] sm:$0xff]
        %v1036 = vld [vmem:[#allocation2 + $0x70] sm:$0xff]
        %v1037 = vld [vmem:[#allocation2 + $0x78] sm:$0xff]
        %v1038 = vld [vmem:[%s4] sm:$0x1]
        %v1040 = vlaneseq
        %v1041 = vshrl.u32 %v1040, 7
        %v1042 = vsub.s32 0, %v1041
        %v1043 = vrot.slane %v1038, %v1042
        %1045 = vmatprep.subr.bf16.mxu0 0
        %1046 = vmatpush1.bf16.msra.mxu0 %v1022
        %1047 = vmatprep.subr.bf16.mxu0 0
        %1048 = vmatpush1.bf16.msra.mxu0 %v1023
        %1049 = vmatprep.subr.bf16.mxu0 0
        %1050 = vmatpush1.bf16.msra.mxu0 %v1024
        %1051 = vmatprep.subr.bf16.mxu0 0
        %1052 = vmatpush1.bf16.msra.mxu0 %v1025
        %1053 = vmatprep.subr.bf16.mxu0 0
        %1054 = vmatpush1.bf16.msra.mxu0 %v1026
        %1055 = vmatprep.subr.bf16.mxu0 0
        %1056 = vmatpush1.bf16.msra.mxu0 %v1027
        %1057 = vmatprep.subr.bf16.mxu0 0
        %1058 = vmatpush1.bf16.msra.mxu0 %v1028
        %1059 = vmatprep.subr.bf16.mxu0 0
        %1060 = vmatpush1.bf16.msra.mxu0 %v1029
        %1061 = vmatprep.subr.bf16.mxu0 0
        %1062 = vmatpush1.bf16.msra.mxu0 %v1030
        %1063 = vmatprep.subr.bf16.mxu0 0
        %1064 = vmatpush1.bf16.msra.mxu0 %v1031
        %1065 = vmatprep.subr.bf16.mxu0 0
        %1066 = vmatpush1.bf16.msra.mxu0 %v1032
        %1067 = vmatprep.subr.bf16.mxu0 0
        %1068 = vmatpush1.bf16.msra.mxu0 %v1033
        %1069 = vmatprep.subr.bf16.mxu0 0
        %1070 = vmatpush1.bf16.msra.mxu0 %v1034
        %1071 = vmatprep.subr.bf16.mxu0 0
        %1072 = vmatpush1.bf16.msra.mxu0 %v1035
        %1073 = vmatprep.subr.bf16.mxu0 0
        %1074 = vmatpush1.bf16.msra.mxu0 %v1036
        %1075 = vmatprep.subr.bf16.mxu0 0
        %1076 = vmatpush1.bf16.msra.mxu0 %v1037
        %1077 = vmatprep.mubr.bf16.mxu0 %v345
        %1078 = vmatmul.mubr.bf16.gmra.mrb[0].mxu0 %v344
        %v1079 = vpop.f32.mrb[0].mxu0
        %v1080 = vadd.f32 %v1043, %v1079
        %v1081 = vpop.f32.mrb[0].mxu0
        %v1082 = vpop.f32.mrb[0].mxu0
        %v1083 = vadd.f32 %v1043, %v1082
        %v1084 = vpop.f32.mrb[0].mxu0
        %1085 = vmatprep.mubr.bf16.mxu0 %v347
        %1086 = vmatmul.mubr.bf16.gmra.mrb[0].mxu0 %v346
        %v1087 = vpop.f32.mrb[0].mxu0
        %v1088 = vadd.f32 %v1043, %v1087
        %v1089 = vpop.f32.mrb[0].mxu0
        %v1090 = vpop.f32.mrb[0].mxu0
        %v1091 = vadd.f32 %v1043, %v1090
        %v1092 = vpop.f32.mrb[0].mxu0
        %1093 = vmatprep.mubr.bf16.mxu0 %v349
        %1094 = vmatmul.mubr.bf16.gmra.mrb[0].mxu0 %v348
        %v1095 = vpop.f32.mrb[0].mxu0
        %v1096 = vadd.f32 %v1043, %v1095
        %v1097 = vpop.f32.mrb[0].mxu0
        %v1098 = vpop.f32.mrb[0].mxu0
        %v1099 = vadd.f32 %v1043, %v1098
        %v1100 = vpop.f32.mrb[0].mxu0
        %1101 = vmatprep.mubr.bf16.mxu0 %v351
        %1102 = vmatmul.mubr.bf16.gmra.mrb[0].mxu0 %v350
        %v1103 = vpop.f32.mrb[0].mxu0
        %v1104 = vadd.f32 %v1043, %v1103
        %v1105 = vpop.f32.mrb[0].mxu0
        %v1106 = vpop.f32.mrb[0].mxu0
        %v1107 = vadd.f32 %v1043, %v1106
        %v1108 = vpop.f32.mrb[0].mxu0
        %1109 = vmatprep.mubr.bf16.mxu0 %v353
        %1110 = vmatmul.mubr.bf16.gmra.mrb[0].mxu0 %v352
        %v1111 = vpop.f32.mrb[0].mxu0
        %v1112 = vadd.f32 %v1043, %v1111
        %v1113 = vpop.f32.mrb[0].mxu0
        %v1114 = vpop.f32.mrb[0].mxu0
        %v1115 = vadd.f32 %v1043, %v1114
        %v1116 = vpop.f32.mrb[0].mxu0
        %1117 = vmatprep.mubr.bf16.mxu0 %v355
        %1118 = vmatmul.mubr.bf16.gmra.mrb[0].mxu0 %v354
        %v1119 = vpop.f32.mrb[0].mxu0
        %v1120 = vadd.f32 %v1043, %v1119
        %v1121 = vpop.f32.mrb[0].mxu0
        %v1122 = vpop.f32.mrb[0].mxu0
        %v1123 = vadd.f32 %v1043, %v1122
        %v1124 = vpop.f32.mrb[0].mxu0
        %1125 = vmatprep.mubr.bf16.mxu0 %v357
        %1126 = vmatmul.mubr.bf16.gmra.mrb[0].mxu0 %v356
        %v1127 = vpop.f32.mrb[0].mxu0
        %v1128 = vadd.f32 %v1043, %v1127
        %v1129 = vpop.f32.mrb[0].mxu0
        %v1130 = vpop.f32.mrb[0].mxu0
        %v1131 = vadd.f32 %v1043, %v1130
        %v1132 = vpop.f32.mrb[0].mxu0
        %1133 = vmatprep.mubr.bf16.mxu0 %v359
        %1134 = vmatmul.mubr.bf16.gmra.mrb[0].mxu0 %v358
        %v1135 = vpop.f32.mrb[0].mxu0
        %v1136 = vadd.f32 %v1043, %v1135
        %v1137 = vpop.f32.mrb[0].mxu0
        %v1138 = vpop.f32.mrb[0].mxu0
        %v1139 = vadd.f32 %v1043, %v1138
        %v1140 = vpop.f32.mrb[0].mxu0
        %1141 = vmatprep.mubr.bf16.mxu0 %v361
        %1142 = vmatmul.mubr.bf16.gmra.mrb[0].mxu0 %v360
        %v1143 = vpop.f32.mrb[0].mxu0
        %v1144 = vadd.f32 %v1043, %v1143
        %v1145 = vpop.f32.mrb[0].mxu0
        %v1146 = vpop.f32.mrb[0].mxu0
        %v1147 = vadd.f32 %v1043, %v1146
        %v1148 = vpop.f32.mrb[0].mxu0
        %1149 = vmatprep.mubr.bf16.mxu0 %v363
        %1150 = vmatmul.mubr.bf16.gmra.mrb[0].mxu0 %v362
        %v1151 = vpop.f32.mrb[0].mxu0
        %v1152 = vadd.f32 %v1043, %v1151
        %v1153 = vpop.f32.mrb[0].mxu0
        %v1154 = vpop.f32.mrb[0].mxu0
        %v1155 = vadd.f32 %v1043, %v1154
        %v1156 = vpop.f32.mrb[0].mxu0
        %1157 = vmatprep.mubr.bf16.mxu0 %v365
        %1158 = vmatmul.mubr.bf16.gmra.mrb[0].mxu0 %v364
        %v1159 = vpop.f32.mrb[0].mxu0
        %v1160 = vadd.f32 %v1043, %v1159
        %v1161 = vpop.f32.mrb[0].mxu0
        %v1162 = vpop.f32.mrb[0].mxu0
        %v1163 = vadd.f32 %v1043, %v1162
        %v1164 = vpop.f32.mrb[0].mxu0
        %1165 = vmatprep.mubr.bf16.mxu0 %v367
        %1166 = vmatmul.mubr.bf16.gmra.mrb[0].mxu0 %v366
        %v1167 = vpop.f32.mrb[0].mxu0
        %v1168 = vadd.f32 %v1043, %v1167
        %v1169 = vpop.f32.mrb[0].mxu0
        %v1170 = vpop.f32.mrb[0].mxu0
        %v1171 = vadd.f32 %v1043, %v1170
        %v1172 = vpop.f32.mrb[0].mxu0
        %1173 = vmatprep.mubr.bf16.mxu0 %v369
        %1174 = vmatmul.mubr.bf16.gmra.mrb[0].mxu0 %v368
        %v1175 = vpop.f32.mrb[0].mxu0
        %v1176 = vadd.f32 %v1043, %v1175
        %v1177 = vpop.f32.mrb[0].mxu0
        %v1178 = vpop.f32.mrb[0].mxu0
        %v1179 = vadd.f32 %v1043, %v1178
        %v1180 = vpop.f32.mrb[0].mxu0
        %1181 = vmatprep.mubr.bf16.mxu0 %v371
        %1182 = vmatmul.mubr.bf16.gmra.mrb[0].mxu0 %v370
        %v1183 = vpop.f32.mrb[0].mxu0
        %v1184 = vadd.f32 %v1043, %v1183
        %v1185 = vpop.f32.mrb[0].mxu0
        %v1186 = vpop.f32.mrb[0].mxu0
        %v1187 = vadd.f32 %v1043, %v1186
        %v1188 = vpop.f32.mrb[0].mxu0
        %1189 = vmatprep.mubr.bf16.mxu0 %v373
        %1190 = vmatmul.mubr.bf16.gmra.mrb[0].mxu0 %v372
        %v1191 = vpop.f32.mrb[0].mxu0
        %v1192 = vadd.f32 %v1043, %v1191
        %v1193 = vpop.f32.mrb[0].mxu0
        %v1194 = vpop.f32.mrb[0].mxu0
        %v1195 = vadd.f32 %v1043, %v1194
        %v1196 = vpop.f32.mrb[0].mxu0
        %1197 = vmatprep.mubr.bf16.mxu0 %v375
        %1198 = vmatmul.mubr.bf16.gmra.mrb[0].mxu0 %v374
        %v1199 = vpop.f32.mrb[0].mxu0
        %v1200 = vadd.f32 %v1043, %v1199
        %v1201 = vpop.f32.mrb[0].mxu0
        %v1202 = vpop.f32.mrb[0].mxu0
        %v1203 = vadd.f32 %v1043, %v1202
        %v1204 = vpop.f32.mrb[0].mxu0
        %1205 = vdwg.mxu0
        %v1206 = vmax.f32 %v1080, 0.0
        %v1207 = vmax.f32 %v1083, 0.0
        %v1208 = vmax.f32 %v1088, 0.0
        %v1209 = vmax.f32 %v1091, 0.0
        %v1210 = vmax.f32 %v1096, 0.0
        %v1211 = vmax.f32 %v1099, 0.0
        %v1212 = vmax.f32 %v1104, 0.0
        %v1213 = vmax.f32 %v1107, 0.0
        %v1214 = vmax.f32 %v1112, 0.0
        %v1215 = vmax.f32 %v1115, 0.0
        %v1216 = vmax.f32 %v1120, 0.0
        %v1217 = vmax.f32 %v1123, 0.0
        %v1218 = vmax.f32 %v1128, 0.0
        %v1219 = vmax.f32 %v1131, 0.0
        %v1220 = vmax.f32 %v1136, 0.0
        %v1221 = vmax.f32 %v1139, 0.0
        %v1222 = vmax.f32 %v1144, 0.0
        %v1223 = vmax.f32 %v1147, 0.0
        %v1224 = vmax.f32 %v1152, 0.0
        %v1225 = vmax.f32 %v1155, 0.0
        %v1226 = vmax.f32 %v1160, 0.0
        %v1227 = vmax.f32 %v1163, 0.0
        %v1228 = vmax.f32 %v1168, 0.0
        %v1229 = vmax.f32 %v1171, 0.0
        %v1230 = vmax.f32 %v1176, 0.0
        %v1231 = vmax.f32 %v1179, 0.0
        %v1232 = vmax.f32 %v1184, 0.0
        %v1233 = vmax.f32 %v1187, 0.0
        %v1234 = vmax.f32 %v1192, 0.0
        %v1235 = vmax.f32 %v1195, 0.0
        %v1236 = vmax.f32 %v1200, 0.0
        %v1237 = vmax.f32 %v1203, 0.0
        %v1238 = vld [vmem:[%s5] sm:$0x1]
        %v1240 = vlaneseq
        %v1241 = vshrl.u32 %v1240, 7
        %v1242 = vsub.s32 0, %v1241
        %v1243 = vrot.slane %v1238, %v1242
        %v1245 = vmul.f32 %v1206, %v1243
        %v1246 = vmul.f32 %v1207, %v1243
        %v1247 = vmul.f32 %v1208, %v1243
        %v1248 = vmul.f32 %v1209, %v1243
        %v1249 = vmul.f32 %v1210, %v1243
        %v1250 = vmul.f32 %v1211, %v1243
        %v1251 = vmul.f32 %v1212, %v1243
        %v1252 = vmul.f32 %v1213, %v1243
        %v1253 = vmul.f32 %v1214, %v1243
        %v1254 = vmul.f32 %v1215, %v1243
        %v1255 = vmul.f32 %v1216, %v1243
        %v1256 = vmul.f32 %v1217, %v1243
        %v1257 = vmul.f32 %v1218, %v1243
        %v1258 = vmul.f32 %v1219, %v1243
        %v1259 = vmul.f32 %v1220, %v1243
        %v1260 = vmul.f32 %v1221, %v1243
        %v1261 = vmul.f32 %v1222, %v1243
        %v1262 = vmul.f32 %v1223, %v1243
        %v1263 = vmul.f32 %v1224, %v1243
        %v1264 = vmul.f32 %v1225, %v1243
        %v1265 = vmul.f32 %v1226, %v1243
        %v1266 = vmul.f32 %v1227, %v1243
        %v1267 = vmul.f32 %v1228, %v1243
        %v1268 = vmul.f32 %v1229, %v1243
        %v1269 = vmul.f32 %v1230, %v1243
        %v1270 = vmul.f32 %v1231, %v1243
        %v1271 = vmul.f32 %v1232, %v1243
        %v1272 = vmul.f32 %v1233, %v1243
        %v1273 = vmul.f32 %v1234, %v1243
        %v1274 = vmul.f32 %v1235, %v1243
        %v1275 = vmul.f32 %v1236, %v1243
        %v1276 = vmul.f32 %v1237, %v1243
        %1277 = vadd.xlane.f32.xlu0 %v1245
        %v1278 = vpop.xlane.xlu0 %1277
        %1279 = vadd.xlane.f32.xlu0 %v1246
        %v1280 = vpop.xlane.xlu0 %1279
        %1281 = vadd.xlane.f32.xlu0 %v1247
        %v1282 = vpop.xlane.xlu0 %1281
        %1283 = vadd.xlane.f32.xlu0 %v1248
        %v1284 = vpop.xlane.xlu0 %1283
        %1285 = vadd.xlane.f32.xlu0 %v1249
        %v1286 = vpop.xlane.xlu0 %1285
        %1287 = vadd.xlane.f32.xlu0 %v1250
        %v1288 = vpop.xlane.xlu0 %1287
        %1289 = vadd.xlane.f32.xlu0 %v1251
        %v1290 = vpop.xlane.xlu0 %1289
        %1291 = vadd.xlane.f32.xlu0 %v1252
        %v1292 = vpop.xlane.xlu0 %1291
        %1293 = vadd.xlane.f32.xlu0 %v1253
        %v1294 = vpop.xlane.xlu0 %1293
        %1295 = vadd.xlane.f32.xlu0 %v1254
        %v1296 = vpop.xlane.xlu0 %1295
        %1297 = vadd.xlane.f32.xlu0 %v1255
        %v1298 = vpop.xlane.xlu0 %1297
        %1299 = vadd.xlane.f32.xlu0 %v1256
        %v1300 = vpop.xlane.xlu0 %1299
        %1301 = vadd.xlane.f32.xlu0 %v1257
        %v1302 = vpop.xlane.xlu0 %1301
        %1303 = vadd.xlane.f32.xlu0 %v1258
        %v1304 = vpop.xlane.xlu0 %1303
        %1305 = vadd.xlane.f32.xlu0 %v1259
        %v1306 = vpop.xlane.xlu0 %1305
        %1307 = vadd.xlane.f32.xlu0 %v1260
        %v1308 = vpop.xlane.xlu0 %1307
        %1309 = vadd.xlane.f32.xlu0 %v1261
        %v1310 = vpop.xlane.xlu0 %1309
        %1311 = vadd.xlane.f32.xlu0 %v1262
        %v1312 = vpop.xlane.xlu0 %1311
        %1313 = vadd.xlane.f32.xlu0 %v1263
        %v1314 = vpop.xlane.xlu0 %1313
        %1315 = vadd.xlane.f32.xlu0 %v1264
        %v1316 = vpop.xlane.xlu0 %1315
        %1317 = vadd.xlane.f32.xlu0 %v1265
        %v1318 = vpop.xlane.xlu0 %1317
        %1319 = vadd.xlane.f32.xlu0 %v1266
        %v1320 = vpop.xlane.xlu0 %1319
        %1321 = vadd.xlane.f32.xlu0 %v1267
        %v1322 = vpop.xlane.xlu0 %1321
        %1323 = vadd.xlane.f32.xlu0 %v1268
        %v1324 = vpop.xlane.xlu0 %1323
        %1325 = vadd.xlane.f32.xlu0 %v1269
        %v1326 = vpop.xlane.xlu0 %1325
        %1327 = vadd.xlane.f32.xlu0 %v1270
        %v1328 = vpop.xlane.xlu0 %1327
        %1329 = vadd.xlane.f32.xlu0 %v1271
        %v1330 = vpop.xlane.xlu0 %1329
        %1331 = vadd.xlane.f32.xlu0 %v1272
        %v1332 = vpop.xlane.xlu0 %1331
        %1333 = vadd.xlane.f32.xlu0 %v1273
        %v1334 = vpop.xlane.xlu0 %1333
        %1335 = vadd.xlane.f32.xlu0 %v1274
        %v1336 = vpop.xlane.xlu0 %1335
        %1337 = vadd.xlane.f32.xlu0 %v1275
        %v1338 = vpop.xlane.xlu0 %1337
        %1339 = vadd.xlane.f32.xlu0 %v1276
        %v1340 = vpop.xlane.xlu0 %1339
        %s1341 = sld [smem:[#allocation3]]
        %v1342 = vstv %s1341
        %v1343 = vadd.f32 %v1278, %v1342
        %v1344 = vadd.f32 %v1280, %v1342
        %v1345 = vadd.f32 %v1282, %v1342
        %v1346 = vadd.f32 %v1284, %v1342
        %v1347 = vadd.f32 %v1286, %v1342
        %v1348 = vadd.f32 %v1288, %v1342
        %v1349 = vadd.f32 %v1290, %v1342
        %v1350 = vadd.f32 %v1292, %v1342
        %v1351 = vadd.f32 %v1294, %v1342
        %v1352 = vadd.f32 %v1296, %v1342
        %v1353 = vadd.f32 %v1298, %v1342
        %v1354 = vadd.f32 %v1300, %v1342
        %v1355 = vadd.f32 %v1302, %v1342
        %v1356 = vadd.f32 %v1304, %v1342
        %v1357 = vadd.f32 %v1306, %v1342
        %v1358 = vadd.f32 %v1308, %v1342
        %v1359 = vadd.f32 %v1310, %v1342
        %v1360 = vadd.f32 %v1312, %v1342
        %v1361 = vadd.f32 %v1314, %v1342
        %v1362 = vadd.f32 %v1316, %v1342
        %v1363 = vadd.f32 %v1318, %v1342
        %v1364 = vadd.f32 %v1320, %v1342
        %v1365 = vadd.f32 %v1322, %v1342
        %v1366 = vadd.f32 %v1324, %v1342
        %v1367 = vadd.f32 %v1326, %v1342
        %v1368 = vadd.f32 %v1328, %v1342
        %v1369 = vadd.f32 %v1330, %v1342
        %v1370 = vadd.f32 %v1332, %v1342
        %v1371 = vadd.f32 %v1334, %v1342
        %v1372 = vadd.f32 %v1336, %v1342
        %v1373 = vadd.f32 %v1338, %v1342
        %v1374 = vadd.f32 %v1340, %v1342
        %vm1375 = vcmask 7168
        %1376 = vst.msk [vmem:[%s271] sm:$0xff] %vm1375, %v1343
        %1377 = vst.msk [vmem:[%s271 + $0x8] sm:$0xff] %vm1375, %v1344
        %1378 = vst.msk [vmem:[%s271 + $0x10] sm:$0xff] %vm1375, %v1345
        %1379 = vst.msk [vmem:[%s271 + $0x18] sm:$0xff] %vm1375, %v1346
        %1380 = vst.msk [vmem:[%s271 + $0x20] sm:$0xff] %vm1375, %v1347
        %1381 = vst.msk [vmem:[%s271 + $0x28] sm:$0xff] %vm1375, %v1348
        %1382 = vst.msk [vmem:[%s271 + $0x30] sm:$0xff] %vm1375, %v1349
        %1383 = vst.msk [vmem:[%s271 + $0x38] sm:$0xff] %vm1375, %v1350
        %1384 = vst.msk [vmem:[%s271 + $0x40] sm:$0xff] %vm1375, %v1351
        %1385 = vst.msk [vmem:[%s271 + $0x48] sm:$0xff] %vm1375, %v1352
        %1386 = vst.msk [vmem:[%s271 + $0x50] sm:$0xff] %vm1375, %v1353
        %1387 = vst.msk [vmem:[%s271 + $0x58] sm:$0xff] %vm1375, %v1354
        %1388 = vst.msk [vmem:[%s271 + $0x60] sm:$0xff] %vm1375, %v1355
        %1389 = vst.msk [vmem:[%s271 + $0x68] sm:$0xff] %vm1375, %v1356
        %1390 = vst.msk [vmem:[%s271 + $0x70] sm:$0xff] %vm1375, %v1357
        %1391 = vst.msk [vmem:[%s271 + $0x78] sm:$0xff] %vm1375, %v1358
        %1392 = vst.msk [vmem:[%s271 + $0x80] sm:$0xff] %vm1375, %v1359
        %1393 = vst.msk [vmem:[%s271 + $0x88] sm:$0xff] %vm1375, %v1360
        %1394 = vst.msk [vmem:[%s271 + $0x90] sm:$0xff] %vm1375, %v1361
        %1395 = vst.msk [vmem:[%s271 + $0x98] sm:$0xff] %vm1375, %v1362
        %1396 = vst.msk [vmem:[%s271 + $0xa0] sm:$0xff] %vm1375, %v1363
        %1397 = vst.msk [vmem:[%s271 + $0xa8] sm:$0xff] %vm1375, %v1364
        %1398 = vst.msk [vmem:[%s271 + $0xb0] sm:$0xff] %vm1375, %v1365
        %1399 = vst.msk [vmem:[%s271 + $0xb8] sm:$0xff] %vm1375, %v1366
        %1400 = vst.msk [vmem:[%s271 + $0xc0] sm:$0xff] %vm1375, %v1367
        %1401 = vst.msk [vmem:[%s271 + $0xc8] sm:$0xff] %vm1375, %v1368
        %1402 = vst.msk [vmem:[%s271 + $0xd0] sm:$0xff] %vm1375, %v1369
        %1403 = vst.msk [vmem:[%s271 + $0xd8] sm:$0xff] %vm1375, %v1370
        %1404 = vst.msk [vmem:[%s271 + $0xe0] sm:$0xff] %vm1375, %v1371
        %1405 = vst.msk [vmem:[%s271 + $0xe8] sm:$0xff] %vm1375, %v1372
        %1406 = vst.msk [vmem:[%s271 + $0xf0] sm:$0xff] %vm1375, %v1373
        %1407 = vst.msk [vmem:[%s271 + $0xf8] sm:$0xff] %vm1375, %v1374
      $region56: #{gpn_valuator_forward.1} parent=47 // pred_fallthru
        _
      %s1408 = smul.u32 32, %s24
      %p1409 = scmp.lt.s32.totalorder %s1408, 31
      %s1410 = scalar_select %p1409, %s1408, 31
      %s1411 = smul.addr %s1410, 8
      %s1412 = scalar_lea.vmem %s7, %s1411
      // Predicated region
      $region57: #{gpn_valuator_forward.1} parent=47 // pred_check
        %p1413 = pneg %p196
      $region58: #{gpn_valuator_forward.1} parent=47 // pred_check_branch
        %1415 = sbr.rel (%p1413) target = $region60
      $region59: #{gpn_valuator_forward.1} parent=47 // pred_region
        %s1416 = smul.u32 32, %s24
      $region60: #{gpn_valuator_forward.1} parent=47 // pred_fallthru
        _
      // Predicated region
      $region61: #{gpn_valuator_forward.1} parent=47 // pred_check
        %p1417 = pneg %p196
      $region62: #{gpn_valuator_forward.1} parent=47 // pred_check_branch
        %1419 = sbr.rel (%p1417) target = $region64
      $region63: #{gpn_valuator_forward.1} parent=47 // pred_region
        %s1420 = smul.u32 32, %s24
        %p1421 = scmp.lt.s32.totalorder %s1420, 31
        %s1422 = scalar_select %p1421, %s1420, 31
        %s1423 = smul.addr %s1422, 8
        %s1424 = scalar_lea.vmem %s7, %s1423
      $region64: #{gpn_valuator_forward.1} parent=47 // pred_fallthru
        _
    $region48: #{gpn_valuator_forward.1} parent=5 // pred_fallthru
      _
    %p1425 = scmp.le.s32.totalorder 2, %s14
    // Predicated region
    $region65: #{gpn_valuator_forward.1} parent=5 // pred_check
      %p1426 = pneg %p1425
    $region66: #{gpn_valuator_forward.1} parent=5 // pred_check_branch
      %1428 = sbr.rel (%p1426) target = $region68
    $region67: #{gpn_valuator_forward.1} parent=5 // pred_region
      %s1429 = ssub.s32 %s14, 2
    $region68: #{gpn_valuator_forward.1} parent=5 // pred_fallthru
      _
  $region6: #{gpn_valuator_forward.1} parent=0 // loop_footer
    %s18 = sadd.s32 1, %s14
  $region7: #{gpn_valuator_forward.1} parent=0 // loop_footer_branch
    %13 = sbr.rel target = $region3
  $region8: #{gpn_valuator_forward.1} parent=0 // loop_exit
    _

</llo_original>
